<compile_context>
chip_gen: v5e
topology: v5e:2x2
jax: 0.10.0
libtpu: 0.0.40
codegen_flags: <defaults>
</compile_context>

<pallas_src>
import math

import jax
import jax.numpy as jnp
from jax import lax
from jax.experimental import pallas as pl
from jax.experimental.pallas import tpu as pltpu

# TODO(synk): nn.Dropout is stochastic; it is treated as identity (p = 0).

_VMEM_LIMIT = 32 * 1024 * 1024  # explicit scoped-VMEM limit (safe on v5e/v6e/v7x)


# ---------------------------------------------------------------------------
# In-kernel helpers (traced inside the fused kernels)
# ---------------------------------------------------------------------------

def _add_layernorm(x, y, gamma, beta):
    # AddNorm: LN(dropout(Y) + X) with dropout = identity; biased var, eps=1e-12.
    z = x + y
    mean = jnp.mean(z, axis=-1, keepdims=True)
    var = jnp.mean(jnp.square(z - mean), axis=-1, keepdims=True)
    return gamma * ((z - mean) * lax.rsqrt(var + 1e-12)) + beta


def _masked_softmax(scores, mask):
    # Reference sets masked-out scores to 1e-6 (NOT -inf) BEFORE softmax.
    scores = jnp.where(mask, scores, jnp.float32(1e-6))
    scores = scores - jnp.max(scores, axis=-1, keepdims=True)
    p = jnp.exp(scores)
    return p * pl.reciprocal(jnp.sum(p, axis=-1, keepdims=True), approx=True)


def _mha(xq_b, xkv_b, wq, wk, wv, wo, mask, num_heads):
    """Multi-head attention for ONE batch element.

    Heads are kept on a leading (batch) axis for every contraction, so there
    is no sub-128-lane column extraction anywhere; the head merge is a lane
    concatenation followed by one full-D W_o matmul.

    xq_b  : [Sq, D]   bf16
    xkv_b : [Skv, D]  bf16
    wq/wk/wv : [H, D, dh] bf16   (per-head projections, head axis LEADING)
    wo    : [D, D]    bf16
    mask  : bool, shape [1, Sq, Skv] (broadcast over heads)
    """
    Sq, D = xq_b.shape
    Skv = xkv_b.shape[0]
    H = num_heads
    dh = D // H
    scale = jnp.float32(1.0 / math.sqrt(dh))

    xq_h = jnp.broadcast_to(xq_b[None], (H, Sq, D))
    xkv_h = jnp.broadcast_to(xkv_b[None], (H, Skv, D))

    dn_proj = (((2,), (1,)), ((0,), (0,)))     # contract D, batch over heads
    q = lax.dot_general(xq_h, wq, dn_proj, preferred_element_type=jnp.float32)
    k = lax.dot_general(xkv_h, wk, dn_proj, preferred_element_type=jnp.float32)
    v = lax.dot_general(xkv_h, wv, dn_proj, preferred_element_type=jnp.float32)

    dn_score = (((2,), (2,)), ((0,), (0,)))    # contract dh, batch over heads
    s = lax.dot_general(q.astype(jnp.bfloat16), k.astype(jnp.bfloat16),
                        dn_score, preferred_element_type=jnp.float32) * scale
    p = _masked_softmax(s, mask)               # [H, Sq, Skv]

    dn_pv = (((2,), (1,)), ((0,), (0,)))       # contract Skv, batch over heads
    o = lax.dot_general(p.astype(jnp.bfloat16), v.astype(jnp.bfloat16),
                        dn_pv, preferred_element_type=jnp.float32)  # [H, Sq, dh]

    # Concatenate heads along lanes -> [Sq, D], then ONE full-D output matmul.
    o_cat = jnp.concatenate([o[h] for h in range(H)], axis=-1)
    return jnp.dot(o_cat.astype(jnp.bfloat16), wo,
                   preferred_element_type=jnp.float32)              # [Sq, D]


def _ffn(y_bf16, w1, b1, w2, b2):
    h = jnp.dot(y_bf16, w1, preferred_element_type=jnp.float32) + b1
    h = jnp.maximum(h, 0.0)
    return jnp.dot(h.astype(jnp.bfloat16), w2,
                   preferred_element_type=jnp.float32) + b2


# ---------------------------------------------------------------------------
# Encoder stack kernel: grid = (batch parallel, block arbitrary)
# ---------------------------------------------------------------------------

def encoder_forward(x3d, valid_len, st, num_heads):
    B, S, D = x3d.shape
    n_blk = st["wq"].shape[0]
    F = st["w1"].shape[2]
    H = num_heads
    dh = D // H

    def kernel(vl_ref, x_ref, wq_ref, wk_ref, wv_ref, wo_ref,
               w1_ref, b1_ref, w2_ref, b2_ref,
               g1_ref, be1_ref, g2_ref, be2_ref, o_ref, xs_ref):
        b = pl.program_id(0)
        i = pl.program_id(1)

        @pl.when(i == 0)
        def _():
            xs_ref[...] = x_ref[0]          # load this batch element once

        x = xs_ref[...]
        # key j attended iff j < enc_valid_len[b] (same for all heads / rows)
        kidx = lax.broadcasted_iota(jnp.int32, (1, S, S), 2)
        mask = kidx < vl_ref[b]

        xb = x.astype(jnp.bfloat16)         # cast once, reused for q/k/v
        att = _mha(xb, xb, wq_ref[0], wk_ref[0], wv_ref[0], wo_ref[0], mask, H)
        y = _add_layernorm(x, att, g1_ref[0], be1_ref[0])
        f = _ffn(y.astype(jnp.bfloat16), w1_ref[0], b1_ref[0],
                 w2_ref[0], b2_ref[0])
        xn = _add_layernorm(y, f, g2_ref[0], be2_ref[0])
        xs_ref[...] = xn                    # carry activation to next block

        @pl.when(i == pl.num_programs(1) - 1)
        def _():
            o_ref[0] = xn.astype(o_ref.dtype)

    act = lambda b, i, vl: (b, 0, 0)
    par3 = lambda b, i, vl: (i, 0, 0)
    par4 = lambda b, i, vl: (i, 0, 0, 0)

    args = (valid_len, x3d, st["wq"], st["wk"], st["wv"], st["wo"],
            st["w1"], st["b1"], st["w2"], st["b2"],
            st["g1"], st["be1"], st["g2"], st["be2"])

    flops = B * n_blk * (8 * S * D * D + 4 * S * S * D + 4 * S * D * F)
    trans = B * n_blk * (H * S * S + 4 * S)
    bytes_acc = sum(int(a.size) * a.dtype.itemsize for a in args) + B * S * D * 2

    return pl.pallas_call(
        kernel,
        out_shape=jax.ShapeDtypeStruct((B, S, D), jnp.bfloat16),
        grid_spec=pltpu.PrefetchScalarGridSpec(
            num_scalar_prefetch=1,
            grid=(B, n_blk),
            in_specs=[
                pl.BlockSpec((1, S, D), act),          # x (resident per batch)
                pl.BlockSpec((1, H, D, dh), par4),     # wq
                pl.BlockSpec((1, H, D, dh), par4),     # wk
                pl.BlockSpec((1, H, D, dh), par4),     # wv
                pl.BlockSpec((1, D, D), par3),         # wo
                pl.BlockSpec((1, D, F), par3),         # w1
                pl.BlockSpec((1, 1, F), par3),         # b1
                pl.BlockSpec((1, F, D), par3),         # w2
                pl.BlockSpec((1, 1, D), par3),         # b2
                pl.BlockSpec((1, 1, D), par3),         # gamma1
                pl.BlockSpec((1, 1, D), par3),         # beta1
                pl.BlockSpec((1, 1, D), par3),         # gamma2
                pl.BlockSpec((1, 1, D), par3),         # beta2
            ],
            out_specs=pl.BlockSpec((1, S, D), act),
            scratch_shapes=[pltpu.VMEM((S, D), jnp.float32)],
        ),
        compiler_params=pltpu.CompilerParams(
            dimension_semantics=("parallel", "arbitrary"),
            vmem_limit_bytes=_VMEM_LIMIT),
        cost_estimate=pl.CostEstimate(flops=int(flops), transcendentals=int(trans),
                                      bytes_accessed=int(bytes_acc)),
    )(*args)


# ---------------------------------------------------------------------------
# Decoder stack kernel: grid = (batch parallel, block arbitrary)
# ---------------------------------------------------------------------------

def decoder_forward(x3d, enc3d, valid_len, st, num_heads):
    B, Sd, D = x3d.shape
    Se = enc3d.shape[1]
    n_blk = st["wq1"].shape[0]
    F = st["w1"].shape[2]
    H = num_heads
    dh = D // H

    def kernel(vl_ref, x_ref, enc_ref,
               wq1_ref, wk1_ref, wv1_ref, wo1_ref,
               wq2_ref, wk2_ref, wv2_ref, wo2_ref,
               w1_ref, b1_ref, w2_ref, b2_ref,
               g1_ref, be1_ref, g2_ref, be2_ref, g3_ref, be3_ref,
               o_ref, xs_ref):
        b = pl.program_id(0)
        i = pl.program_id(1)

        @pl.when(i == 0)
        def _():
            xs_ref[...] = x_ref[0]

        x = xs_ref[...]
        enc_b = enc_ref[0]                  # [Se, D] bf16 (already bf16)

        # training-mode causal mask (dec_valid_len = arange(1, Sd+1))
        qi = lax.broadcasted_iota(jnp.int32, (1, Sd, Sd), 1)
        ki = lax.broadcasted_iota(jnp.int32, (1, Sd, Sd), 2)
        self_mask = ki <= qi
        cki = lax.broadcasted_iota(jnp.int32, (1, Sd, Se), 2)
        cross_mask = cki < vl_ref[b]

        xb = x.astype(jnp.bfloat16)
        att1 = _mha(xb, xb, wq1_ref[0], wk1_ref[0], wv1_ref[0], wo1_ref[0],
                    self_mask, H)
        y1 = _add_layernorm(x, att1, g1_ref[0], be1_ref[0])
        att2 = _mha(y1.astype(jnp.bfloat16), enc_b,
                    wq2_ref[0], wk2_ref[0], wv2_ref[0], wo2_ref[0],
                    cross_mask, H)
        y2 = _add_layernorm(y1, att2, g2_ref[0], be2_ref[0])
        f = _ffn(y2.astype(jnp.bfloat16), w1_ref[0], b1_ref[0],
                 w2_ref[0], b2_ref[0])
        xn = _add_layernorm(y2, f, g3_ref[0], be3_ref[0])
        xs_ref[...] = xn

        @pl.when(i == pl.num_programs(1) - 1)
        def _():
            o_ref[0] = xn.astype(o_ref.dtype)

    act = lambda b, i, vl: (b, 0, 0)
    par3 = lambda b, i, vl: (i, 0, 0)
    par4 = lambda b, i, vl: (i, 0, 0, 0)
    whead = pl.BlockSpec((1, H, D, dh), par4)
    wsq = pl.BlockSpec((1, D, D), par3)
    vecD = pl.BlockSpec((1, 1, D), par3)

    args = (valid_len, x3d, enc3d,
            st["wq1"], st["wk1"], st["wv1"], st["wo1"],
            st["wq2"], st["wk2"], st["wv2"], st["wo2"],
            st["w1"], st["b1"], st["w2"], st["b2"],
            st["g1"], st["be1"], st["g2"], st["be2"], st["g3"], st["be3"])

    flops = B * n_blk * (12 * Sd * D * D + 4 * Sd * Sd * D + 4 * Se * D * D
                         + 4 * Sd * Se * D + 4 * Sd * D * F)
    trans = B * n_blk * (H * Sd * Sd + H * Sd * Se + 6 * Sd)
    bytes_acc = sum(int(a.size) * a.dtype.itemsize for a in args) + B * Sd * D * 2

    return pl.pallas_call(
        kernel,
        out_shape=jax.ShapeDtypeStruct((B, Sd, D), jnp.bfloat16),
        grid_spec=pltpu.PrefetchScalarGridSpec(
            num_scalar_prefetch=1,
            grid=(B, n_blk),
            in_specs=[
                pl.BlockSpec((1, Sd, D), act),     # decoder activations
                pl.BlockSpec((1, Se, D), act),     # encoder output (bf16 K/V)
                whead, whead, whead, wsq,          # self-attn  q/k/v/o
                whead, whead, whead, wsq,          # cross-attn q/k/v/o
                pl.BlockSpec((1, D, F), par3),     # w1
                pl.BlockSpec((1, 1, F), par3),     # b1
                pl.BlockSpec((1, F, D), par3),     # w2
                vecD,                              # b2
                vecD, vecD, vecD, vecD, vecD, vecD,  # gamma/beta 1..3
            ],
            out_specs=pl.BlockSpec((1, Sd, D), act),
            scratch_shapes=[pltpu.VMEM((Sd, D), jnp.float32)],
        ),
        compiler_params=pltpu.CompilerParams(
            dimension_semantics=("parallel", "arbitrary"),
            vmem_limit_bytes=_VMEM_LIMIT),
        cost_estimate=pl.CostEstimate(flops=int(flops), transcendentals=int(trans),
                                      bytes_accessed=int(bytes_acc)),
    )(*args)


# ---------------------------------------------------------------------------
# Output projection kernel: tiled over (rows, padded-vocab columns)
# ---------------------------------------------------------------------------

def _pick_tile(n, candidates):
    for c in candidates:
        if n % c == 0:
            return c
    return n


def output_projection(x2d, w_pad, b_pad):
    M, D = x2d.shape
    Vp = w_pad.shape[1]
    tm = _pick_tile(M, (256, 128, 64, 32, 16, 8))
    tv = _pick_tile(Vp, (512, 256, 128))

    def kernel(x_ref, w_ref, bias_ref, o_ref):
        o_ref[...] = (jnp.dot(x_ref[...], w_ref[...],
                              preferred_element_type=jnp.float32) + bias_ref[...])

    flops = 2 * M * D * Vp
    bytes_acc = M * D * 2 + D * Vp * 2 + Vp * 4 + M * Vp * 4

    return pl.pallas_call(
        kernel,
        out_shape=jax.ShapeDtypeStruct((M, Vp), jnp.float32),
        grid=(M // tm, Vp // tv),
        in_specs=[pl.BlockSpec((tm, D), lambda i, j: (i, 0)),
                  pl.BlockSpec((D, tv), lambda i, j: (0, j)),
                  pl.BlockSpec((1, tv), lambda i, j: (0, j))],
        out_specs=pl.BlockSpec((tm, tv), lambda i, j: (i, j)),
        compiler_params=pltpu.CompilerParams(
            dimension_semantics=("parallel", "parallel"),
            vmem_limit_bytes=_VMEM_LIMIT),
        cost_estimate=pl.CostEstimate(flops=int(flops), transcendentals=0,
                                      bytes_accessed=int(bytes_acc)),
    )(x2d, w_pad, b_pad)


# ---------------------------------------------------------------------------
# Model glue (embedding / positional encoding / parameter plumbing in JAX)
# ---------------------------------------------------------------------------

def make_pos_enc(seq_max_len, D):
    pos = jnp.arange(seq_max_len, dtype=jnp.float32)[:, None]
    div = jnp.power(10000.0, jnp.arange(0, D, 2, dtype=jnp.float32) / D)
    ang = pos / div
    pe = jnp.zeros((seq_max_len, D), jnp.float32)
    pe = pe.at[:, 0::2].set(jnp.sin(ang))
    pe = pe.at[:, 1::2].set(jnp.cos(ang))
    return pe


def my_transformer_forward(params, srcX, tarX, enc_valid_len, contex_time_step,
                           num_heads, num_hiddens):
    del contex_time_step  # unused by the reference forward as well
    D = num_hiddens
    B, S_enc = srcX.shape
    S_dec = tarX.shape[1]
    pe = params["pos_enc"]

    x_enc = params["enc_emb"][srcX] * math.sqrt(D) + pe[:S_enc][None, :, :]
    x_dec = params["dec_emb"][tarX] * math.sqrt(D) + pe[:S_dec][None, :, :]
    vl = enc_valid_len.astype(jnp.int32)

    enc_out = encoder_forward(x_enc, vl, params["enc_stack"], num_heads)
    dec_out = decoder_forward(x_dec, enc_out, vl, params["dec_stack"], num_heads)
    logits = output_projection(dec_out.reshape(B * S_dec, D),
                               params["out_w_pad"], params["out_b_pad"])
    V = params["vocab_tar"]
    return logits[:, :V].reshape(B, S_dec, V)


# ---------------------------------------------------------------------------
# Deterministic parameter construction (per-block stacked, bf16 MXU weights)
# ---------------------------------------------------------------------------

def init_params(key, num_heads, num_hiddens, seq_max_len, ffn_h_size,
                num_blks_enc, num_blks_dec, vocab_src, vocab_tar):
    D, F, H = num_hiddens, ffn_h_size, num_heads
    dh = D // H
    keys = iter(jax.random.split(key, 4096))

    def w(shape, scale=0.05):
        return scale * jax.random.normal(next(keys), shape, dtype=jnp.float32)

    def w_heads():
        # a [D, D] projection re-laid-out with the head axis LEADING: [H, D, dh]
        return w((D, D)).reshape(D, H, dh).transpose(1, 0, 2)

    def stack_heads(n):
        return jnp.stack([w_heads() for _ in range(n)]).astype(jnp.bfloat16)

    def stack_sq(n):
        return jnp.stack([w((D, D)) for _ in range(n)]).astype(jnp.bfloat16)

    def ffn_params(n):
        return (jnp.stack([w((D, F)) for _ in range(n)]).astype(jnp.bfloat16),
                jnp.stack([w((1, F)) for _ in range(n)]),
                jnp.stack([w((F, D)) for _ in range(n)]).astype(jnp.bfloat16),
                jnp.stack([w((1, D)) for _ in range(n)]))

    def ln(n):
        return jnp.ones((n, 1, D), jnp.float32), jnp.zeros((n, 1, D), jnp.float32)

    def enc_stack(n):
        w1, b1, w2, b2 = ffn_params(n)
        g1, be1 = ln(n)
        g2, be2 = ln(n)
        return dict(wq=stack_heads(n), wk=stack_heads(n), wv=stack_heads(n),
                    wo=stack_sq(n), w1=w1, b1=b1, w2=w2, b2=b2,
                    g1=g1, be1=be1, g2=g2, be2=be2)

    def dec_stack(n):
        w1, b1, w2, b2 = ffn_params(n)
        g1, be1 = ln(n)
        g2, be2 = ln(n)
        g3, be3 = ln(n)
        return dict(wq1=stack_heads(n), wk1=stack_heads(n), wv1=stack_heads(n),
                    wo1=stack_sq(n),
                    wq2=stack_heads(n), wk2=stack_heads(n), wv2=stack_heads(n),
                    wo2=stack_sq(n),
                    w1=w1, b1=b1, w2=w2, b2=b2,
                    g1=g1, be1=be1, g2=g2, be2=be2, g3=g3, be3=be3)

    vpad = ((vocab_tar + 127) // 128) * 128
    out_w = w((D, vocab_tar))
    out_w_pad = jnp.zeros((D, vpad), jnp.float32).at[:, :vocab_tar].set(out_w)
    out_b_pad = jnp.zeros((1, vpad), jnp.float32)

    return {
        "enc_emb": w((vocab_src, D), scale=1.0),
        "dec_emb": w((vocab_tar, D), scale=1.0),
        "pos_enc": make_pos_enc(seq_max_len, D),
        "enc_stack": enc_stack(num_blks_enc),
        "dec_stack": dec_stack(num_blks_dec),
        "out_w_pad": out_w_pad.astype(jnp.bfloat16),
        "out_b_pad": out_b_pad,
        "vocab_tar": vocab_tar,
    }


# ---------------------------------------------------------------------------

if __name__ == "__main__":
    num_heads = 4
    num_hiddens = 32
    seq_max_len = 16
    ffn_h_size = 64
    num_blks_enc = 2
    num_blks_dec = 2
    vocab_src = 50
    vocab_tar = 60
    B, S = 2, 8

    root = jax.random.PRNGKey(0)
    k_params, k_src, k_tar = jax.random.split(root, 3)

    params = init_params(k_params, num_heads, num_hiddens, seq_max_len,
                         ffn_h_size, num_blks_enc, num_blks_dec,
                         vocab_src, vocab_tar)

    srcX = jax.random.randint(k_src, (B, S), 0, vocab_src, dtype=jnp.int32)
    tarX = jax.random.randint(k_tar, (B, S), 0, vocab_tar, dtype=jnp.int32)
    enc_valid_len = jnp.array([5, 8], dtype=jnp.int32)
    contex_time_step = 0  # unused by the forward pass (matches the reference)

    out = my_transformer_forward(params, srcX, tarX, enc_valid_len,
                                 contex_time_step, num_heads, num_hiddens)
    out = jax.block_until_ready(out)

    assert out.shape == (B, S, vocab_tar), out.shape
    assert jnp.all(jnp.isfinite(out))
    print("KERNEL_OK")
</pallas_src>

<mosaic_0001>
module attributes {stable_mosaic.version = 11 : i64} {
  func.func @kernel(%arg0: i32, %arg1: i32, %arg2: memref<2xi32, #tpu.memory_space<smem>>, %arg3: memref<1x8x32xf32, #tpu.memory_space<vmem>>, %arg4: memref<1x4x32x8xbf16, #tpu.memory_space<vmem>>, %arg5: memref<1x4x32x8xbf16, #tpu.memory_space<vmem>>, %arg6: memref<1x4x32x8xbf16, #tpu.memory_space<vmem>>, %arg7: memref<1x32x32xbf16, #tpu.memory_space<vmem>>, %arg8: memref<1x32x64xbf16, #tpu.memory_space<vmem>>, %arg9: memref<1x1x64xf32, #tpu.memory_space<vmem>>, %arg10: memref<1x64x32xbf16, #tpu.memory_space<vmem>>, %arg11: memref<1x1x32xf32, #tpu.memory_space<vmem>>, %arg12: memref<1x1x32xf32, #tpu.memory_space<vmem>>, %arg13: memref<1x1x32xf32, #tpu.memory_space<vmem>>, %arg14: memref<1x1x32xf32, #tpu.memory_space<vmem>>, %arg15: memref<1x1x32xf32, #tpu.memory_space<vmem>>, %arg16: memref<1x8x32xbf16, #tpu.memory_space<vmem>>, %arg17: memref<8x32xf32, #tpu.memory_space<vmem>>) attributes {dimension_semantics = [#tpu.dimension_semantics<parallel>, #tpu.dimension_semantics<arbitrary>], iteration_bounds = array<i64: 2, 2>, scalar_prefetch = 1 : i64, scratch_operands = 1 : i64, tpu.core_type = #tpu.core_type<tc>, window_params = [{transform_indices = @transform_0, window_bounds = array<i64: 1, 8, 32>}, {transform_indices = @transform_1, window_bounds = array<i64: 1, 4, 32, 8>}, {transform_indices = @transform_2, window_bounds = array<i64: 1, 4, 32, 8>}, {transform_indices = @transform_3, window_bounds = array<i64: 1, 4, 32, 8>}, {transform_indices = @transform_4, window_bounds = array<i64: 1, 32, 32>}, {transform_indices = @transform_5, window_bounds = array<i64: 1, 32, 64>}, {transform_indices = @transform_6, window_bounds = array<i64: 1, 1, 64>}, {transform_indices = @transform_7, window_bounds = array<i64: 1, 64, 32>}, {transform_indices = @transform_8, window_bounds = array<i64: 1, 1, 32>}, {transform_indices = @transform_9, window_bounds = array<i64: 1, 1, 32>}, {transform_indices = @transform_10, window_bounds = array<i64: 1, 1, 32>}, {transform_indices = @transform_11, window_bounds = array<i64: 1, 1, 32>}, {transform_indices = @transform_12, window_bounds = array<i64: 1, 1, 32>}, {transform_indices = @transform_13, window_bounds = array<i64: 1, 8, 32>}]} {
    %c0_i32 = arith.constant 0 : i32
    %0 = arith.cmpi eq, %arg1, %c0_i32 : i32
    %1 = arith.extui %0 : i1 to i32
    %c0_i32_0 = arith.constant 0 : i32
    %2 = arith.cmpi ne, %1, %c0_i32_0 : i32
    scf.if %2 {
      %c0_66 = arith.constant 0 : index
      %c0_67 = arith.constant 0 : index
      %c0_68 = arith.constant 0 : index
      %136 = vector.load %arg3[%c0_66, %c0_67, %c0_68] : memref<1x8x32xf32, #tpu.memory_space<vmem>>, vector<1x8x32xf32>
      %137 = vector.shape_cast %136 : vector<1x8x32xf32> to vector<8x32xf32>
      %c0_69 = arith.constant 0 : index
      %c0_70 = arith.constant 0 : index
      %138 = vector.load %arg17[%c0_69, %c0_70] : memref<8x32xf32, #tpu.memory_space<vmem>>, vector<8x32xf32>
      tpu.vector_store %arg17[%c0_69, %c0_70], %137 {strides = array<i32>} : memref<8x32xf32, #tpu.memory_space<vmem>>, vector<8x32xf32>,
    } else {
    }
    %c0 = arith.constant 0 : index
    %c0_1 = arith.constant 0 : index
    %3 = vector.load %arg17[%c0, %c0_1] : memref<8x32xf32, #tpu.memory_space<vmem>>, vector<8x32xf32>
    %4 = tpu.iota {dimensions = array<i32: 2>} : vector<1x8x8xi32>
    %5 = arith.index_cast %arg0 : i32 to index
    %6 = memref.load %arg2[%5] : memref<2xi32, #tpu.memory_space<smem>>
    %7 = vector.broadcast %6 : i32 to vector<1x8x8xi32>
    %8 = arith.cmpi slt, %4, %7 : vector<1x8x8xi32>
    %9 = arith.truncf %3 : vector<8x32xf32> to vector<8x32xbf16>
    %c0_2 = arith.constant 0 : index
    %c0_3 = arith.constant 0 : index
    %c0_4 = arith.constant 0 : index
    %c0_5 = arith.constant 0 : index
    %10 = vector.load %arg4[%c0_2, %c0_3, %c0_4, %c0_5] : memref<1x4x32x8xbf16, #tpu.memory_space<vmem>>, vector<1x4x32x8xbf16>
    %11 = vector.shape_cast %10 : vector<1x4x32x8xbf16> to vector<4x32x8xbf16>
    %c0_6 = arith.constant 0 : index
    %c0_7 = arith.constant 0 : index
    %c0_8 = arith.constant 0 : index
    %c0_9 = arith.constant 0 : index
    %12 = vector.load %arg5[%c0_6, %c0_7, %c0_8, %c0_9] : memref<1x4x32x8xbf16, #tpu.memory_space<vmem>>, vector<1x4x32x8xbf16>
    %13 = vector.shape_cast %12 : vector<1x4x32x8xbf16> to vector<4x32x8xbf16>
    %c0_10 = arith.constant 0 : index
    %c0_11 = arith.constant 0 : index
    %c0_12 = arith.constant 0 : index
    %c0_13 = arith.constant 0 : index
    %14 = vector.load %arg6[%c0_10, %c0_11, %c0_12, %c0_13] : memref<1x4x32x8xbf16, #tpu.memory_space<vmem>>, vector<1x4x32x8xbf16>
    %15 = vector.shape_cast %14 : vector<1x4x32x8xbf16> to vector<4x32x8xbf16>
    %c0_14 = arith.constant 0 : index
    %c0_15 = arith.constant 0 : index
    %c0_16 = arith.constant 0 : index
    %16 = vector.load %arg7[%c0_14, %c0_15, %c0_16] : memref<1x32x32xbf16, #tpu.memory_space<vmem>>, vector<1x32x32xbf16>
    %17 = vector.shape_cast %16 : vector<1x32x32xbf16> to vector<32x32xbf16>
    %18 = vector.shape_cast %9 : vector<8x32xbf16> to vector<1x8x32xbf16>
    %19 = vector.shape_cast %18 : vector<1x8x32xbf16> to vector<1x8x32xbf16>
    %20 = vector.broadcast %19 : vector<1x8x32xbf16> to vector<4x8x32xbf16>
    %21 = vector.shape_cast %9 : vector<8x32xbf16> to vector<1x8x32xbf16>
    %22 = vector.shape_cast %21 : vector<1x8x32xbf16> to vector<1x8x32xbf16>
    %23 = vector.broadcast %22 : vector<1x8x32xbf16> to vector<4x8x32xbf16>
    %cst = arith.constant dense<0.000000e+00> : vector<4x8x8xf32>
    %24 = tpu.matmul %20, %11, %cst {dimension_numbers = #tpu.dot_dimension_numbers<[2], [1], [1], [2], [0, 0, 0, 1, 1, 2], [0], [0]>} : vector<4x8x32xbf16>, vector<4x32x8xbf16>, vector<4x8x8xf32> -> vector<4x8x8xf32>
    %cst_17 = arith.constant dense<0.000000e+00> : vector<4x8x8xf32>
    %25 = tpu.matmul %23, %13, %cst_17 {dimension_numbers = #tpu.dot_dimension_numbers<[2], [1], [1], [2], [0, 0, 0, 1, 1, 2], [0], [0]>} : vector<4x8x32xbf16>, vector<4x32x8xbf16>, vector<4x8x8xf32> -> vector<4x8x8xf32>
    %cst_18 = arith.constant dense<0.000000e+00> : vector<4x8x8xf32>
    %26 = tpu.matmul %23, %15, %cst_18 {dimension_numbers = #tpu.dot_dimension_numbers<[2], [1], [1], [2], [0, 0, 0, 1, 1, 2], [0], [0]>} : vector<4x8x32xbf16>, vector<4x32x8xbf16>, vector<4x8x8xf32> -> vector<4x8x8xf32>
    %27 = arith.truncf %24 : vector<4x8x8xf32> to vector<4x8x8xbf16>
    %28 = arith.truncf %25 : vector<4x8x8xf32> to vector<4x8x8xbf16>
    %cst_19 = arith.constant dense<0.000000e+00> : vector<4x8x8xf32>
    %29 = tpu.matmul %27, %28, %cst_19 {dimension_numbers = #tpu.dot_dimension_numbers<[2], [2], [1], [1], [0, 0, 0, 1, 1, 1], [0], [0]>} : vector<4x8x8xbf16>, vector<4x8x8xbf16>, vector<4x8x8xf32> -> vector<4x8x8xf32>
    %cst_20 = arith.constant 0.353553385 : f32
    %30 = vector.broadcast %cst_20 : f32 to vector<4x8x8xf32>
    %31 = arith.mulf %29, %30 : vector<4x8x8xf32>
    %cst_21 = arith.constant 9.99999997E-7 : f32
    %32 = vector.shape_cast %8 : vector<1x8x8xi1> to vector<1x8x8xi1>
    %33 = vector.broadcast %32 : vector<1x8x8xi1> to vector<4x8x8xi1>
    %34 = vector.broadcast %cst_21 : f32 to vector<4x8x8xf32>
    %35 = arith.select %33, %31, %34 : vector<4x8x8xi1>, vector<4x8x8xf32>
    %cst_22 = arith.constant dense<0xFF800000> : vector<4x8xf32>
    %36 = vector.multi_reduction <maximumf>, %35, %cst_22 [2] : vector<4x8x8xf32> to vector<4x8xf32>
    %37 = vector.shape_cast %36 : vector<4x8xf32> to vector<4x8x1xf32>
    %38 = vector.broadcast %37 : vector<4x8x1xf32> to vector<4x8x8xf32>
    %39 = arith.subf %35, %38 : vector<4x8x8xf32>
    %40 = math.exp %39 : vector<4x8x8xf32>
    %cst_23 = arith.constant dense<0.000000e+00> : vector<4x8xf32>
    %41 = vector.multi_reduction <add>, %40, %cst_23 [2] : vector<4x8x8xf32> to vector<4x8xf32>
    %42 = vector.shape_cast %41 : vector<4x8xf32> to vector<4x8x1xf32>
    %43 = tpu.reciprocal %42 {approx = true} : vector<4x8x1xf32> -> vector<4x8x1xf32>
    %44 = vector.broadcast %43 : vector<4x8x1xf32> to vector<4x8x8xf32>
    %45 = arith.mulf %40, %44 : vector<4x8x8xf32>
    %46 = arith.truncf %45 : vector<4x8x8xf32> to vector<4x8x8xbf16>
    %47 = arith.truncf %26 : vector<4x8x8xf32> to vector<4x8x8xbf16>
    %cst_24 = arith.constant dense<0.000000e+00> : vector<4x8x8xf32>
    %48 = tpu.matmul %46, %47, %cst_24 {dimension_numbers = #tpu.dot_dimension_numbers<[2], [1], [1], [2], [0, 0, 0, 1, 1, 2], [0], [0]>} : vector<4x8x8xbf16>, vector<4x8x8xbf16>, vector<4x8x8xf32> -> vector<4x8x8xf32>
    %49 = vector.extract_strided_slice %48 {offsets = [0, 0, 0], sizes = [1, 8, 8], strides = [1, 1, 1]} : vector<4x8x8xf32> to vector<1x8x8xf32>
    %50 = vector.shape_cast %49 : vector<1x8x8xf32> to vector<8x8xf32>
    %51 = vector.extract_strided_slice %48 {offsets = [1, 0, 0], sizes = [1, 8, 8], strides = [1, 1, 1]} : vector<4x8x8xf32> to vector<1x8x8xf32>
    %52 = vector.shape_cast %51 : vector<1x8x8xf32> to vector<8x8xf32>
    %53 = vector.extract_strided_slice %48 {offsets = [2, 0, 0], sizes = [1, 8, 8], strides = [1, 1, 1]} : vector<4x8x8xf32> to vector<1x8x8xf32>
    %54 = vector.shape_cast %53 : vector<1x8x8xf32> to vector<8x8xf32>
    %55 = vector.extract_strided_slice %48 {offsets = [3, 0, 0], sizes = [1, 8, 8], strides = [1, 1, 1]} : vector<4x8x8xf32> to vector<1x8x8xf32>
    %56 = vector.shape_cast %55 : vector<1x8x8xf32> to vector<8x8xf32>
    %57 = tpu.concatenate %50, %52, %54, %56 in 1 : vector<8x8xf32>, vector<8x8xf32>, vector<8x8xf32>, vector<8x8xf32> -> vector<8x32xf32>
    %58 = arith.truncf %57 : vector<8x32xf32> to vector<8x32xbf16>
    %cst_25 = arith.constant dense<0.000000e+00> : vector<8x32xf32>
    %59 = tpu.matmul %58, %17, %cst_25 {dimension_numbers = #tpu.dot_dimension_numbers<[1], [0], [0], [1], [0, 0, 1, 1], [], []>} : vector<8x32xbf16>, vector<32x32xbf16>, vector<8x32xf32> -> vector<8x32xf32>
    %c0_26 = arith.constant 0 : index
    %c0_27 = arith.constant 0 : index
    %c0_28 = arith.constant 0 : index
    %60 = vector.load %arg12[%c0_26, %c0_27, %c0_28] : memref<1x1x32xf32, #tpu.memory_space<vmem>>, vector<1x1x32xf32>
    %61 = vector.shape_cast %60 : vector<1x1x32xf32> to vector<1x32xf32>
    %c0_29 = arith.constant 0 : index
    %c0_30 = arith.constant 0 : index
    %c0_31 = arith.constant 0 : index
    %62 = vector.load %arg13[%c0_29, %c0_30, %c0_31] : memref<1x1x32xf32, #tpu.memory_space<vmem>>, vector<1x1x32xf32>
    %63 = vector.shape_cast %62 : vector<1x1x32xf32> to vector<1x32xf32>
    %64 = arith.addf %3, %59 : vector<8x32xf32>
    %cst_32 = arith.constant dense<0.000000e+00> : vector<8xf32>
    %65 = vector.multi_reduction <add>, %64, %cst_32 [1] : vector<8x32xf32> to vector<8xf32>
    %66 = vector.shape_cast %65 : vector<8xf32> to vector<8x1xf32>
    %cst_33 = arith.constant 3.200000e+01 : f32
    %67 = vector.broadcast %cst_33 : f32 to vector<8x1xf32>
    %68 = arith.divf %66, %67 : vector<8x1xf32>
    %69 = vector.broadcast %68 : vector<8x1xf32> to vector<8x32xf32>
    %70 = arith.subf %64, %69 : vector<8x32xf32>
    %71 = arith.mulf %70, %70 : vector<8x32xf32>
    %cst_34 = arith.constant dense<0.000000e+00> : vector<8xf32>
    %72 = vector.multi_reduction <add>, %71, %cst_34 [1] : vector<8x32xf32> to vector<8xf32>
    %73 = vector.shape_cast %72 : vector<8xf32> to vector<8x1xf32>
    %cst_35 = arith.constant 3.200000e+01 : f32
    %74 = vector.broadcast %cst_35 : f32 to vector<8x1xf32>
    %75 = arith.divf %73, %74 : vector<8x1xf32>
    %76 = vector.broadcast %68 : vector<8x1xf32> to vector<8x32xf32>
    %77 = arith.subf %64, %76 : vector<8x32xf32>
    %cst_36 = arith.constant 9.99999996E-13 : f32
    %78 = vector.broadcast %cst_36 : f32 to vector<8x1xf32>
    %79 = arith.addf %75, %78 : vector<8x1xf32>
    %80 = math.rsqrt %79 : vector<8x1xf32>
    %81 = vector.broadcast %80 : vector<8x1xf32> to vector<8x32xf32>
    %82 = arith.mulf %77, %81 : vector<8x32xf32>
    %83 = vector.broadcast %61 : vector<1x32xf32> to vector<8x32xf32>
    %84 = arith.mulf %83, %82 : vector<8x32xf32>
    %85 = vector.broadcast %63 : vector<1x32xf32> to vector<8x32xf32>
    %86 = arith.addf %84, %85 : vector<8x32xf32>
    %87 = arith.truncf %86 : vector<8x32xf32> to vector<8x32xbf16>
    %c0_37 = arith.constant 0 : index
    %c0_38 = arith.constant 0 : index
    %c0_39 = arith.constant 0 : index
    %88 = vector.load %arg8[%c0_37, %c0_38, %c0_39] : memref<1x32x64xbf16, #tpu.memory_space<vmem>>, vector<1x32x64xbf16>
    %89 = vector.shape_cast %88 : vector<1x32x64xbf16> to vector<32x64xbf16>
    %c0_40 = arith.constant 0 : index
    %c0_41 = arith.constant 0 : index
    %c0_42 = arith.constant 0 : index
    %90 = vector.load %arg9[%c0_40, %c0_41, %c0_42] : memref<1x1x64xf32, #tpu.memory_space<vmem>>, vector<1x1x64xf32>
    %91 = vector.shape_cast %90 : vector<1x1x64xf32> to vector<1x64xf32>
    %c0_43 = arith.constant 0 : index
    %c0_44 = arith.constant 0 : index
    %c0_45 = arith.constant 0 : index
    %92 = vector.load %arg10[%c0_43, %c0_44, %c0_45] : memref<1x64x32xbf16, #tpu.memory_space<vmem>>, vector<1x64x32xbf16>
    %93 = vector.shape_cast %92 : vector<1x64x32xbf16> to vector<64x32xbf16>
    %c0_46 = arith.constant 0 : index
    %c0_47 = arith.constant 0 : index
    %c0_48 = arith.constant 0 : index
    %94 = vector.load %arg11[%c0_46, %c0_47, %c0_48] : memref<1x1x32xf32, #tpu.memory_space<vmem>>, vector<1x1x32xf32>
    %95 = vector.shape_cast %94 : vector<1x1x32xf32> to vector<1x32xf32>
    %cst_49 = arith.constant dense<0.000000e+00> : vector<8x64xf32>
    %96 = tpu.matmul %87, %89, %cst_49 {dimension_numbers = #tpu.dot_dimension_numbers<[1], [0], [0], [1], [0, 0, 1, 1], [], []>} : vector<8x32xbf16>, vector<32x64xbf16>, vector<8x64xf32> -> vector<8x64xf32>
    %97 = vector.broadcast %91 : vector<1x64xf32> to vector<8x64xf32>
    %98 = arith.addf %96, %97 : vector<8x64xf32>
    %cst_50 = arith.constant 0.000000e+00 : f32
    %99 = vector.broadcast %cst_50 : f32 to vector<8x64xf32>
    %100 = arith.maximumf %98, %99 : vector<8x64xf32>
    %101 = arith.truncf %100 : vector<8x64xf32> to vector<8x64xbf16>
    %cst_51 = arith.constant dense<0.000000e+00> : vector<8x32xf32>
    %102 = tpu.matmul %101, %93, %cst_51 {dimension_numbers = #tpu.dot_dimension_numbers<[1], [0], [0], [1], [0, 0, 1, 1], [], []>} : vector<8x64xbf16>, vector<64x32xbf16>, vector<8x32xf32> -> vector<8x32xf32>
    %103 = vector.broadcast %95 : vector<1x32xf32> to vector<8x32xf32>
    %104 = arith.addf %102, %103 : vector<8x32xf32>
    %c0_52 = arith.constant 0 : index
    %c0_53 = arith.constant 0 : index
    %c0_54 = arith.constant 0 : index
    %105 = vector.load %arg14[%c0_52, %c0_53, %c0_54] : memref<1x1x32xf32, #tpu.memory_space<vmem>>, vector<1x1x32xf32>
    %106 = vector.shape_cast %105 : vector<1x1x32xf32> to vector<1x32xf32>
    %c0_55 = arith.constant 0 : index
    %c0_56 = arith.constant 0 : index
    %c0_57 = arith.constant 0 : index
    %107 = vector.load %arg15[%c0_55, %c0_56, %c0_57] : memref<1x1x32xf32, #tpu.memory_space<vmem>>, vector<1x1x32xf32>
    %108 = vector.shape_cast %107 : vector<1x1x32xf32> to vector<1x32xf32>
    %109 = arith.addf %86, %104 : vector<8x32xf32>
    %cst_58 = arith.constant dense<0.000000e+00> : vector<8xf32>
    %110 = vector.multi_reduction <add>, %109, %cst_58 [1] : vector<8x32xf32> to vector<8xf32>
    %111 = vector.shape_cast %110 : vector<8xf32> to vector<8x1xf32>
    %cst_59 = arith.constant 3.200000e+01 : f32
    %112 = vector.broadcast %cst_59 : f32 to vector<8x1xf32>
    %113 = arith.divf %111, %112 : vector<8x1xf32>
    %114 = vector.broadcast %113 : vector<8x1xf32> to vector<8x32xf32>
    %115 = arith.subf %109, %114 : vector<8x32xf32>
    %116 = arith.mulf %115, %115 : vector<8x32xf32>
    %cst_60 = arith.constant dense<0.000000e+00> : vector<8xf32>
    %117 = vector.multi_reduction <add>, %116, %cst_60 [1] : vector<8x32xf32> to vector<8xf32>
    %118 = vector.shape_cast %117 : vector<8xf32> to vector<8x1xf32>
    %cst_61 = arith.constant 3.200000e+01 : f32
    %119 = vector.broadcast %cst_61 : f32 to vector<8x1xf32>
    %120 = arith.divf %118, %119 : vector<8x1xf32>
    %121 = vector.broadcast %113 : vector<8x1xf32> to vector<8x32xf32>
    %122 = arith.subf %109, %121 : vector<8x32xf32>
    %cst_62 = arith.constant 9.99999996E-13 : f32
    %123 = vector.broadcast %cst_62 : f32 to vector<8x1xf32>
    %124 = arith.addf %120, %123 : vector<8x1xf32>
    %125 = math.rsqrt %124 : vector<8x1xf32>
    %126 = vector.broadcast %125 : vector<8x1xf32> to vector<8x32xf32>
    %127 = arith.mulf %122, %126 : vector<8x32xf32>
    %128 = vector.broadcast %106 : vector<1x32xf32> to vector<8x32xf32>
    %129 = arith.mulf %128, %127 : vector<8x32xf32>
    %130 = vector.broadcast %108 : vector<1x32xf32> to vector<8x32xf32>
    %131 = arith.addf %129, %130 : vector<8x32xf32>
    %c0_63 = arith.constant 0 : index
    %c0_64 = arith.constant 0 : index
    %132 = vector.load %arg17[%c0_63, %c0_64] : memref<8x32xf32, #tpu.memory_space<vmem>>, vector<8x32xf32>
    tpu.vector_store %arg17[%c0_63, %c0_64], %131 {strides = array<i32>} : memref<8x32xf32, #tpu.memory_space<vmem>>, vector<8x32xf32>,
    %c1_i32 = arith.constant 1 : i32
    %133 = arith.cmpi eq, %arg1, %c1_i32 : i32
    %134 = arith.extui %133 : i1 to i32
    %c0_i32_65 = arith.constant 0 : i32
    %135 = arith.cmpi ne, %134, %c0_i32_65 : i32
    scf.if %135 {
      %136 = arith.truncf %131 : vector<8x32xf32> to vector<8x32xbf16>
      %c0_66 = arith.constant 0 : index
      %c0_67 = arith.constant 0 : index
      %c0_68 = arith.constant 0 : index
      %137 = vector.load %arg16[%c0_66, %c0_67, %c0_68] : memref<1x8x32xbf16, #tpu.memory_space<vmem>>, vector<1x8x32xbf16>
      %138 = vector.shape_cast %137 : vector<1x8x32xbf16> to vector<8x32xbf16>
      %139 = vector.shape_cast %136 : vector<8x32xbf16> to vector<1x8x32xbf16>
      tpu.vector_store %arg16[%c0_66, %c0_67, %c0_68], %139 {strides = array<i32>} : memref<1x8x32xbf16, #tpu.memory_space<vmem>>, vector<1x8x32xbf16>,
    } else {
    }
    return
  }
  func.func @transform_0(%arg0: i32, %arg1: i32, %arg2: memref<2xi32, #tpu.memory_space<smem>>) -> (i32, i32, i32) {
    %c0_i32 = arith.constant 0 : i32
    %c0_i32_0 = arith.constant 0 : i32
    %c0_i32_1 = arith.constant 0 : i32
    return %arg0, %c0_i32, %c0_i32_0 : i32, i32, i32
  }
  func.func @transform_1(%arg0: i32, %arg1: i32, %arg2: memref<2xi32, #tpu.memory_space<smem>>) -> (i32, i32, i32, i32) {
    %c0_i32 = arith.constant 0 : i32
    %c0_i32_0 = arith.constant 0 : i32
    %c0_i32_1 = arith.constant 0 : i32
    %c0_i32_2 = arith.constant 0 : i32
    return %arg1, %c0_i32, %c0_i32_0, %c0_i32_1 : i32, i32, i32, i32
  }
  func.func @transform_2(%arg0: i32, %arg1: i32, %arg2: memref<2xi32, #tpu.memory_space<smem>>) -> (i32, i32, i32, i32) {
    %c0_i32 = arith.constant 0 : i32
    %c0_i32_0 = arith.constant 0 : i32
    %c0_i32_1 = arith.constant 0 : i32
    %c0_i32_2 = arith.constant 0 : i32
    return %arg1, %c0_i32, %c0_i32_0, %c0_i32_1 : i32, i32, i32, i32
  }
  func.func @transform_3(%arg0: i32, %arg1: i32, %arg2: memref<2xi32, #tpu.memory_space<smem>>) -> (i32, i32, i32, i32) {
    %c0_i32 = arith.constant 0 : i32
    %c0_i32_0 = arith.constant 0 : i32
    %c0_i32_1 = arith.constant 0 : i32
    %c0_i32_2 = arith.constant 0 : i32
    return %arg1, %c0_i32, %c0_i32_0, %c0_i32_1 : i32, i32, i32, i32
  }
  func.func @transform_4(%arg0: i32, %arg1: i32, %arg2: memref<2xi32, #tpu.memory_space<smem>>) -> (i32, i32, i32) {
    %c0_i32 = arith.constant 0 : i32
    %c0_i32_0 = arith.constant 0 : i32
    %c0_i32_1 = arith.constant 0 : i32
    return %arg1, %c0_i32, %c0_i32_0 : i32, i32, i32
  }
  func.func @transform_5(%arg0: i32, %arg1: i32, %arg2: memref<2xi32, #tpu.memory_space<smem>>) -> (i32, i32, i32) {
    %c0_i32 = arith.constant 0 : i32
    %c0_i32_0 = arith.constant 0 : i32
    %c0_i32_1 = arith.constant 0 : i32
    return %arg1, %c0_i32, %c0_i32_0 : i32, i32, i32
  }
  func.func @transform_6(%arg0: i32, %arg1: i32, %arg2: memref<2xi32, #tpu.memory_space<smem>>) -> (i32, i32, i32) {
    %c0_i32 = arith.constant 0 : i32
    %c0_i32_0 = arith.constant 0 : i32
    %c0_i32_1 = arith.constant 0 : i32
    return %arg1, %c0_i32, %c0_i32_0 : i32, i32, i32
  }
  func.func @transform_7(%arg0: i32, %arg1: i32, %arg2: memref<2xi32, #tpu.memory_space<smem>>) -> (i32, i32, i32) {
    %c0_i32 = arith.constant 0 : i32
    %c0_i32_0 = arith.constant 0 : i32
    %c0_i32_1 = arith.constant 0 : i32
    return %arg1, %c0_i32, %c0_i32_0 : i32, i32, i32
  }
  func.func @transform_8(%arg0: i32, %arg1: i32, %arg2: memref<2xi32, #tpu.memory_space<smem>>) -> (i32, i32, i32) {
    %c0_i32 = arith.constant 0 : i32
    %c0_i32_0 = arith.constant 0 : i32
    %c0_i32_1 = arith.constant 0 : i32
    return %arg1, %c0_i32, %c0_i32_0 : i32, i32, i32
  }
  func.func @transform_9(%arg0: i32, %arg1: i32, %arg2: memref<2xi32, #tpu.memory_space<smem>>) -> (i32, i32, i32) {
    %c0_i32 = arith.constant 0 : i32
    %c0_i32_0 = arith.constant 0 : i32
    %c0_i32_1 = arith.constant 0 : i32
    return %arg1, %c0_i32, %c0_i32_0 : i32, i32, i32
  }
  func.func @transform_10(%arg0: i32, %arg1: i32, %arg2: memref<2xi32, #tpu.memory_space<smem>>) -> (i32, i32, i32) {
    %c0_i32 = arith.constant 0 : i32
    %c0_i32_0 = arith.constant 0 : i32
    %c0_i32_1 = arith.constant 0 : i32
    return %arg1, %c0_i32, %c0_i32_0 : i32, i32, i32
  }
  func.func @transform_11(%arg0: i32, %arg1: i32, %arg2: memref<2xi32, #tpu.memory_space<smem>>) -> (i32, i32, i32) {
    %c0_i32 = arith.constant 0 : i32
    %c0_i32_0 = arith.constant 0 : i32
    %c0_i32_1 = arith.constant 0 : i32
    return %arg1, %c0_i32, %c0_i32_0 : i32, i32, i32
  }
  func.func @transform_12(%arg0: i32, %arg1: i32, %arg2: memref<2xi32, #tpu.memory_space<smem>>) -> (i32, i32, i32) {
    %c0_i32 = arith.constant 0 : i32
    %c0_i32_0 = arith.constant 0 : i32
    %c0_i32_1 = arith.constant 0 : i32
    return %arg1, %c0_i32, %c0_i32_0 : i32, i32, i32
  }
  func.func @transform_13(%arg0: i32, %arg1: i32, %arg2: memref<2xi32, #tpu.memory_space<smem>>) -> (i32, i32, i32) {
    %c0_i32 = arith.constant 0 : i32
    %c0_i32_0 = arith.constant 0 : i32
    %c0_i32_1 = arith.constant 0 : i32
    return %arg0, %c0_i32, %c0_i32_0 : i32, i32, i32
  }
}

</mosaic_0001>

<llo_original>
// kernel: tpu_custom_call.1
$region0: #{tpu_custom_call.1}
  #allocation0 [shape = 'u32[]', space=smem, size = 0x4, offset = 0x4, fixed_abs, tag = 'smem constant byte address 0x4 - core index']
  #allocation1 [shape = 'u32[72,128]{1,0:T(1,128)}', space=vmem, size = 0x9000, scoped, tag = 'internal scratch']
  #allocation2 [shape = 'f32[8,32]{1,0:T(8,128)}', space=vmem, size = 0x1000, scoped, tag = 'scratch operand']
  #allocation3 [shape = 's32[1]{0}', space=sflag, size = 0x4, scoped, tag = 'scoped memory for tpu_custom_call.1']
  #allocation4 [shape = 'u8[512]{0}', space=smem, size = 0x200, scoped, tag = 'prefetched SMEM operand 0']
  %s0 = inlined_call_operand.vmem [shape: s32[2], index: 0, kind: input, shape index: {}]
  %s1 = inlined_call_operand.vmem [shape: f32[2,8,32], index: 1, kind: input, shape index: {}]
  %s2 = inlined_call_operand.vmem [shape: bf16[2,4,32,8], index: 2, kind: input, shape index: {}]
  %s3 = inlined_call_operand.vmem [shape: bf16[2,4,32,8], index: 3, kind: input, shape index: {}]
  %s4 = inlined_call_operand.vmem [shape: bf16[2,4,32,8], index: 4, kind: input, shape index: {}]
  %s5 = inlined_call_operand.vmem [shape: bf16[2,32,32], index: 5, kind: input, shape index: {}]
  %s6 = inlined_call_operand.vmem [shape: bf16[2,32,64], index: 6, kind: input, shape index: {}]
  %s7 = inlined_call_operand.vmem [shape: f32[2,1,64], index: 7, kind: input, shape index: {}]
  %s8 = inlined_call_operand.vmem [shape: bf16[2,64,32], index: 8, kind: input, shape index: {}]
  %s9 = inlined_call_operand.vmem [shape: f32[2,1,32], index: 9, kind: input, shape index: {}]
  %s10 = inlined_call_operand.vmem [shape: f32[2,1,32], index: 10, kind: input, shape index: {}]
  %s11 = inlined_call_operand.vmem [shape: f32[2,1,32], index: 11, kind: input, shape index: {}]
  %s12 = inlined_call_operand.vmem [shape: f32[2,1,32], index: 12, kind: input, shape index: {}]
  %s13 = inlined_call_operand.vmem [shape: f32[2,1,32], index: 13, kind: input, shape index: {}]
  %s14 = inlined_call_operand.hbm [shape: bf16[2,8,32], index: 14, kind: output, shape index: {}]
  %s15 = sld [smem:[#allocation0]]
  $region93: #{tpu_custom_call.1} parent=0
    _
  %s17 = ssub.s32 1, %s15
  %s18 = scalar_select 0, %s17, %s15
  %s20 = sshll.u32 %s0, 4
  %s21 = int_to_ptr.vmem [resolvable:$true] %s20
  %23 = dma.vmem_to_smem %s21, 16, [#allocation4], [#allocation3]
  %25 = dma.done [#allocation3], 16
  %26 = sfence
  $region1: #{tpu_custom_call.1} parent=0
    #allocation5 [shape = 'u8[4096]{0}', space=vmem, size = 0x1000, scoped, tag = 'output window, operand 0']
    #allocation6 [shape = 's32[2]{0}', space=sflag, size = 0x8, scoped, tag = 'scoped memory for tpu_custom_call.1']
    %27 = vsyncpa [#allocation6], 0
    %s28 = scalar_lea.sflag [#allocation6], 1
    %29 = vsyncpa %s28, 0
    loop: start=0, step=1, limit=6
    $region2: #{tpu_custom_call.1} parent=1 // loop_pre_header
      _
    $region3: #{tpu_custom_call.1} parent=1 // loop_header
      %s31 = sphi 0, %s35
      %p32 = scmp.ge.s32.totalorder %s31, 6
      %s38 = sphi 0, %s50
      %s39 = sphi 0, %s46
      %s40 = sphi 0, %s38
      %s41 = sphi 0, %s39
      %s42 = sphi 0, %s40
      %s43 = sphi 0, %s41
      %s53 = sphi 0, %s55
      %s56 = sphi 0, %s53
      %s57 = sphi 0, %s56
      %s73 = sphi 0, %s57
      %s79 = sphi 0, %s81
      %s82 = sphi 0, %s79
      %s83 = sphi 0, %s82
      %s99 = sphi 0, %s83
      %s105 = sphi 0, %s107
      %s108 = sphi 0, %s105
      %s109 = sphi 0, %s108
      %s125 = sphi 0, %s109
      %s131 = sphi 0, %s133
      %s134 = sphi 0, %s131
      %s135 = sphi 0, %s134
      %s151 = sphi 0, %s135
      %s157 = sphi 0, %s159
      %s160 = sphi 0, %s157
      %s161 = sphi 0, %s160
      %s177 = sphi 0, %s161
      %s183 = sphi 0, %s185
      %s186 = sphi 0, %s183
      %s187 = sphi 0, %s186
      %s203 = sphi 0, %s187
      %s209 = sphi 0, %s211
      %s212 = sphi 0, %s209
      %s213 = sphi 0, %s212
      %s229 = sphi 0, %s213
      %s235 = sphi 0, %s237
      %s238 = sphi 0, %s235
      %s239 = sphi 0, %s238
      %s255 = sphi 0, %s239
      %s261 = sphi 0, %s263
      %s264 = sphi 0, %s261
      %s265 = sphi 0, %s264
      %s281 = sphi 0, %s265
      %s287 = sphi 0, %s289
      %s290 = sphi 0, %s287
      %s291 = sphi 0, %s290
      %s307 = sphi 0, %s291
      %s313 = sphi 0, %s315
      %s316 = sphi 0, %s313
      %s317 = sphi 0, %s316
      %s333 = sphi 0, %s317
      %s339 = sphi 0, %s341
      %s342 = sphi 0, %s339
      %s343 = sphi 0, %s342
      %s359 = sphi 0, %s343
      %s365 = sphi 0, %s367
      %s368 = sphi 0, %s365
      %s369 = sphi 0, %s368
      %s385 = sphi 0, %s369
      %s391 = sphi 0, %s393
      %s394 = sphi 0, %s391
      %s395 = sphi 0, %s394
      %s411 = sphi 0, %s395
    $region4: #{tpu_custom_call.1} parent=1 // loop_header_branch
      %34 = sbr.rel (%p32) target = $region8
    $region5: #{tpu_custom_call.1} parent=1 // loop_body
      %s36 = ssub.s32 %s31, 1
      %s37 = ssub.s32 %s31, 2
      %s44 = sadd.s32 1, %s39
      %p45 = scmp.ge.s32.totalorder %s44, 2
      %s46 = scalar_select %p45, 0, %s44
      %s47 = sadd.s32 1, %s38
      %s48 = scalar_select %p45, %s47, %s38
      %p49 = scmp.ge.s32.totalorder %s48, 2
      %s50 = scalar_select %p49, 0, %s48
      %s51 = ssub.s32 %s38, %s50
      %p52 = scmp.eq.s32.totalorder %s51, 0
      %s54 = sadd.s32 %s53, 1
      %s55 = scalar_select %p52, %s53, %s54
      %p58 = pneg %p52
      %p59 = scmp.eq.s32.totalorder %s31, 3
      %p60 = por %p58, %p59
      %p61 = scmp.ne.s32.totalorder %s53, %s56
      %p62 = scmp.eq.s32.totalorder %s31, 0
      %p63 = por %p61, %p62
      %p64 = scmp.ne.s32.totalorder %s53, %s56
      %p65 = scmp.eq.s32.totalorder %s36, 3
      %p66 = por %p64, %p65
      %p67 = scmp.ne.s32.totalorder %s56, %s57
      %p68 = scmp.eq.s32.totalorder %s36, 0
      %p69 = por %p67, %p68
      %p70 = scmp.ne.s32.totalorder %s56, %s57
      %p71 = scmp.eq.s32.totalorder %s37, 3
      %p72 = por %p70, %p71
      %p74 = scmp.ne.s32.totalorder %s57, %s73
      %p75 = scmp.eq.s32.totalorder %s37, 0
      %p76 = por %p74, %p75
      %s77 = ssub.s32 %s39, %s46
      %p78 = scmp.eq.s32.totalorder %s77, 0
      %s80 = sadd.s32 %s79, 1
      %s81 = scalar_select %p78, %s79, %s80
      %p84 = pneg %p78
      %p85 = scmp.eq.s32.totalorder %s31, 3
      %p86 = por %p84, %p85
      %p87 = scmp.ne.s32.totalorder %s79, %s82
      %p88 = scmp.eq.s32.totalorder %s31, 0
      %p89 = por %p87, %p88
      %p90 = scmp.ne.s32.totalorder %s79, %s82
      %p91 = scmp.eq.s32.totalorder %s36, 3
      %p92 = por %p90, %p91
      %p93 = scmp.ne.s32.totalorder %s82, %s83
      %p94 = scmp.eq.s32.totalorder %s36, 0
      %p95 = por %p93, %p94
      %p96 = scmp.ne.s32.totalorder %s82, %s83
      %p97 = scmp.eq.s32.totalorder %s37, 3
      %p98 = por %p96, %p97
      %p100 = scmp.ne.s32.totalorder %s83, %s99
      %p101 = scmp.eq.s32.totalorder %s37, 0
      %p102 = por %p100, %p101
      %s103 = ssub.s32 %s39, %s46
      %p104 = scmp.eq.s32.totalorder %s103, 0
      %s106 = sadd.s32 %s105, 1
      %s107 = scalar_select %p104, %s105, %s106
      %p110 = pneg %p104
      %p111 = scmp.eq.s32.totalorder %s31, 3
      %p112 = por %p110, %p111
      %p113 = scmp.ne.s32.totalorder %s105, %s108
      %p114 = scmp.eq.s32.totalorder %s31, 0
      %p115 = por %p113, %p114
      %p116 = scmp.ne.s32.totalorder %s105, %s108
      %p117 = scmp.eq.s32.totalorder %s36, 3
      %p118 = por %p116, %p117
      %p119 = scmp.ne.s32.totalorder %s108, %s109
      %p120 = scmp.eq.s32.totalorder %s36, 0
      %p121 = por %p119, %p120
      %p122 = scmp.ne.s32.totalorder %s108, %s109
      %p123 = scmp.eq.s32.totalorder %s37, 3
      %p124 = por %p122, %p123
      %p126 = scmp.ne.s32.totalorder %s109, %s125
      %p127 = scmp.eq.s32.totalorder %s37, 0
      %p128 = por %p126, %p127
      %s129 = ssub.s32 %s39, %s46
      %p130 = scmp.eq.s32.totalorder %s129, 0
      %s132 = sadd.s32 %s131, 1
      %s133 = scalar_select %p130, %s131, %s132
      %p136 = pneg %p130
      %p137 = scmp.eq.s32.totalorder %s31, 3
      %p138 = por %p136, %p137
      %p139 = scmp.ne.s32.totalorder %s131, %s134
      %p140 = scmp.eq.s32.totalorder %s31, 0
      %p141 = por %p139, %p140
      %p142 = scmp.ne.s32.totalorder %s131, %s134
      %p143 = scmp.eq.s32.totalorder %s36, 3
      %p144 = por %p142, %p143
      %p145 = scmp.ne.s32.totalorder %s134, %s135
      %p146 = scmp.eq.s32.totalorder %s36, 0
      %p147 = por %p145, %p146
      %p148 = scmp.ne.s32.totalorder %s134, %s135
      %p149 = scmp.eq.s32.totalorder %s37, 3
      %p150 = por %p148, %p149
      %p152 = scmp.ne.s32.totalorder %s135, %s151
      %p153 = scmp.eq.s32.totalorder %s37, 0
      %p154 = por %p152, %p153
      %s155 = ssub.s32 %s39, %s46
      %p156 = scmp.eq.s32.totalorder %s155, 0
      %s158 = sadd.s32 %s157, 1
      %s159 = scalar_select %p156, %s157, %s158
      %p162 = pneg %p156
      %p163 = scmp.eq.s32.totalorder %s31, 3
      %p164 = por %p162, %p163
      %p165 = scmp.ne.s32.totalorder %s157, %s160
      %p166 = scmp.eq.s32.totalorder %s31, 0
      %p167 = por %p165, %p166
      %p168 = scmp.ne.s32.totalorder %s157, %s160
      %p169 = scmp.eq.s32.totalorder %s36, 3
      %p170 = por %p168, %p169
      %p171 = scmp.ne.s32.totalorder %s160, %s161
      %p172 = scmp.eq.s32.totalorder %s36, 0
      %p173 = por %p171, %p172
      %p174 = scmp.ne.s32.totalorder %s160, %s161
      %p175 = scmp.eq.s32.totalorder %s37, 3
      %p176 = por %p174, %p175
      %p178 = scmp.ne.s32.totalorder %s161, %s177
      %p179 = scmp.eq.s32.totalorder %s37, 0
      %p180 = por %p178, %p179
      %s181 = ssub.s32 %s39, %s46
      %p182 = scmp.eq.s32.totalorder %s181, 0
      %s184 = sadd.s32 %s183, 1
      %s185 = scalar_select %p182, %s183, %s184
      %p188 = pneg %p182
      %p189 = scmp.eq.s32.totalorder %s31, 3
      %p190 = por %p188, %p189
      %p191 = scmp.ne.s32.totalorder %s183, %s186
      %p192 = scmp.eq.s32.totalorder %s31, 0
      %p193 = por %p191, %p192
      %p194 = scmp.ne.s32.totalorder %s183, %s186
      %p195 = scmp.eq.s32.totalorder %s36, 3
      %p196 = por %p194, %p195
      %p197 = scmp.ne.s32.totalorder %s186, %s187
      %p198 = scmp.eq.s32.totalorder %s36, 0
      %p199 = por %p197, %p198
      %p200 = scmp.ne.s32.totalorder %s186, %s187
      %p201 = scmp.eq.s32.totalorder %s37, 3
      %p202 = por %p200, %p201
      %p204 = scmp.ne.s32.totalorder %s187, %s203
      %p205 = scmp.eq.s32.totalorder %s37, 0
      %p206 = por %p204, %p205
      %s207 = ssub.s32 %s39, %s46
      %p208 = scmp.eq.s32.totalorder %s207, 0
      %s210 = sadd.s32 %s209, 1
      %s211 = scalar_select %p208, %s209, %s210
      %p214 = pneg %p208
      %p215 = scmp.eq.s32.totalorder %s31, 3
      %p216 = por %p214, %p215
      %p217 = scmp.ne.s32.totalorder %s209, %s212
      %p218 = scmp.eq.s32.totalorder %s31, 0
      %p219 = por %p217, %p218
      %p220 = scmp.ne.s32.totalorder %s209, %s212
      %p221 = scmp.eq.s32.totalorder %s36, 3
      %p222 = por %p220, %p221
      %p223 = scmp.ne.s32.totalorder %s212, %s213
      %p224 = scmp.eq.s32.totalorder %s36, 0
      %p225 = por %p223, %p224
      %p226 = scmp.ne.s32.totalorder %s212, %s213
      %p227 = scmp.eq.s32.totalorder %s37, 3
      %p228 = por %p226, %p227
      %p230 = scmp.ne.s32.totalorder %s213, %s229
      %p231 = scmp.eq.s32.totalorder %s37, 0
      %p232 = por %p230, %p231
      %s233 = ssub.s32 %s39, %s46
      %p234 = scmp.eq.s32.totalorder %s233, 0
      %s236 = sadd.s32 %s235, 1
      %s237 = scalar_select %p234, %s235, %s236
      %p240 = pneg %p234
      %p241 = scmp.eq.s32.totalorder %s31, 3
      %p242 = por %p240, %p241
      %p243 = scmp.ne.s32.totalorder %s235, %s238
      %p244 = scmp.eq.s32.totalorder %s31, 0
      %p245 = por %p243, %p244
      %p246 = scmp.ne.s32.totalorder %s235, %s238
      %p247 = scmp.eq.s32.totalorder %s36, 3
      %p248 = por %p246, %p247
      %p249 = scmp.ne.s32.totalorder %s238, %s239
      %p250 = scmp.eq.s32.totalorder %s36, 0
      %p251 = por %p249, %p250
      %p252 = scmp.ne.s32.totalorder %s238, %s239
      %p253 = scmp.eq.s32.totalorder %s37, 3
      %p254 = por %p252, %p253
      %p256 = scmp.ne.s32.totalorder %s239, %s255
      %p257 = scmp.eq.s32.totalorder %s37, 0
      %p258 = por %p256, %p257
      %s259 = ssub.s32 %s39, %s46
      %p260 = scmp.eq.s32.totalorder %s259, 0
      %s262 = sadd.s32 %s261, 1
      %s263 = scalar_select %p260, %s261, %s262
      %p266 = pneg %p260
      %p267 = scmp.eq.s32.totalorder %s31, 3
      %p268 = por %p266, %p267
      %p269 = scmp.ne.s32.totalorder %s261, %s264
      %p270 = scmp.eq.s32.totalorder %s31, 0
      %p271 = por %p269, %p270
      %p272 = scmp.ne.s32.totalorder %s261, %s264
      %p273 = scmp.eq.s32.totalorder %s36, 3
      %p274 = por %p272, %p273
      %p275 = scmp.ne.s32.totalorder %s264, %s265
      %p276 = scmp.eq.s32.totalorder %s36, 0
      %p277 = por %p275, %p276
      %p278 = scmp.ne.s32.totalorder %s264, %s265
      %p279 = scmp.eq.s32.totalorder %s37, 3
      %p280 = por %p278, %p279
      %p282 = scmp.ne.s32.totalorder %s265, %s281
      %p283 = scmp.eq.s32.totalorder %s37, 0
      %p284 = por %p282, %p283
      %s285 = ssub.s32 %s39, %s46
      %p286 = scmp.eq.s32.totalorder %s285, 0
      %s288 = sadd.s32 %s287, 1
      %s289 = scalar_select %p286, %s287, %s288
      %p292 = pneg %p286
      %p293 = scmp.eq.s32.totalorder %s31, 3
      %p294 = por %p292, %p293
      %p295 = scmp.ne.s32.totalorder %s287, %s290
      %p296 = scmp.eq.s32.totalorder %s31, 0
      %p297 = por %p295, %p296
      %p298 = scmp.ne.s32.totalorder %s287, %s290
      %p299 = scmp.eq.s32.totalorder %s36, 3
      %p300 = por %p298, %p299
      %p301 = scmp.ne.s32.totalorder %s290, %s291
      %p302 = scmp.eq.s32.totalorder %s36, 0
      %p303 = por %p301, %p302
      %p304 = scmp.ne.s32.totalorder %s290, %s291
      %p305 = scmp.eq.s32.totalorder %s37, 3
      %p306 = por %p304, %p305
      %p308 = scmp.ne.s32.totalorder %s291, %s307
      %p309 = scmp.eq.s32.totalorder %s37, 0
      %p310 = por %p308, %p309
      %s311 = ssub.s32 %s39, %s46
      %p312 = scmp.eq.s32.totalorder %s311, 0
      %s314 = sadd.s32 %s313, 1
      %s315 = scalar_select %p312, %s313, %s314
      %p318 = pneg %p312
      %p319 = scmp.eq.s32.totalorder %s31, 3
      %p320 = por %p318, %p319
      %p321 = scmp.ne.s32.totalorder %s313, %s316
      %p322 = scmp.eq.s32.totalorder %s31, 0
      %p323 = por %p321, %p322
      %p324 = scmp.ne.s32.totalorder %s313, %s316
      %p325 = scmp.eq.s32.totalorder %s36, 3
      %p326 = por %p324, %p325
      %p327 = scmp.ne.s32.totalorder %s316, %s317
      %p328 = scmp.eq.s32.totalorder %s36, 0
      %p329 = por %p327, %p328
      %p330 = scmp.ne.s32.totalorder %s316, %s317
      %p331 = scmp.eq.s32.totalorder %s37, 3
      %p332 = por %p330, %p331
      %p334 = scmp.ne.s32.totalorder %s317, %s333
      %p335 = scmp.eq.s32.totalorder %s37, 0
      %p336 = por %p334, %p335
      %s337 = ssub.s32 %s39, %s46
      %p338 = scmp.eq.s32.totalorder %s337, 0
      %s340 = sadd.s32 %s339, 1
      %s341 = scalar_select %p338, %s339, %s340
      %p344 = pneg %p338
      %p345 = scmp.eq.s32.totalorder %s31, 3
      %p346 = por %p344, %p345
      %p347 = scmp.ne.s32.totalorder %s339, %s342
      %p348 = scmp.eq.s32.totalorder %s31, 0
      %p349 = por %p347, %p348
      %p350 = scmp.ne.s32.totalorder %s339, %s342
      %p351 = scmp.eq.s32.totalorder %s36, 3
      %p352 = por %p350, %p351
      %p353 = scmp.ne.s32.totalorder %s342, %s343
      %p354 = scmp.eq.s32.totalorder %s36, 0
      %p355 = por %p353, %p354
      %p356 = scmp.ne.s32.totalorder %s342, %s343
      %p357 = scmp.eq.s32.totalorder %s37, 3
      %p358 = por %p356, %p357
      %p360 = scmp.ne.s32.totalorder %s343, %s359
      %p361 = scmp.eq.s32.totalorder %s37, 0
      %p362 = por %p360, %p361
      %s363 = ssub.s32 %s39, %s46
      %p364 = scmp.eq.s32.totalorder %s363, 0
      %s366 = sadd.s32 %s365, 1
      %s367 = scalar_select %p364, %s365, %s366
      %p370 = pneg %p364
      %p371 = scmp.eq.s32.totalorder %s31, 3
      %p372 = por %p370, %p371
      %p373 = scmp.ne.s32.totalorder %s365, %s368
      %p374 = scmp.eq.s32.totalorder %s31, 0
      %p375 = por %p373, %p374
      %p376 = scmp.ne.s32.totalorder %s365, %s368
      %p377 = scmp.eq.s32.totalorder %s36, 3
      %p378 = por %p376, %p377
      %p379 = scmp.ne.s32.totalorder %s368, %s369
      %p380 = scmp.eq.s32.totalorder %s36, 0
      %p381 = por %p379, %p380
      %p382 = scmp.ne.s32.totalorder %s368, %s369
      %p383 = scmp.eq.s32.totalorder %s37, 3
      %p384 = por %p382, %p383
      %p386 = scmp.ne.s32.totalorder %s369, %s385
      %p387 = scmp.eq.s32.totalorder %s37, 0
      %p388 = por %p386, %p387
      %s389 = ssub.s32 %s38, %s50
      %p390 = scmp.eq.s32.totalorder %s389, 0
      %s392 = sadd.s32 %s391, 1
      %s393 = scalar_select %p390, %s391, %s392
      %p396 = pneg %p390
      %p397 = scmp.eq.s32.totalorder %s31, 3
      %p398 = por %p396, %p397
      %p399 = scmp.ne.s32.totalorder %s391, %s394
      %p400 = scmp.eq.s32.totalorder %s31, 0
      %p401 = por %p399, %p400
      %p402 = scmp.ne.s32.totalorder %s391, %s394
      %p403 = scmp.eq.s32.totalorder %s36, 3
      %p404 = por %p402, %p403
      %p405 = scmp.ne.s32.totalorder %s394, %s395
      %p406 = scmp.eq.s32.totalorder %s36, 0
      %p407 = por %p405, %p406
      %p408 = scmp.ne.s32.totalorder %s394, %s395
      %p409 = scmp.eq.s32.totalorder %s37, 3
      %p410 = por %p408, %p409
      %p412 = scmp.ne.s32.totalorder %s395, %s411
      %p413 = scmp.eq.s32.totalorder %s37, 0
      %p414 = por %p412, %p413
      %p415 = scmp.le.s32.totalorder 1, %s31
      %p416 = scmp.lt.s32.totalorder %s31, 5
      %p417 = pnand %p415, %p416
      %p418 = pneg %p417
      // Predicated region
      $region9: #{tpu_custom_call.1} parent=5 // pred_check
        _
      $region10: #{tpu_custom_call.1} parent=5 // pred_check_branch
        %420 = sbr.rel (%p417) target = $region12
      $region11: #{tpu_custom_call.1} parent=5 // pred_region
        %s421 = ssub.s32 %s31, 1
      $region12: #{tpu_custom_call.1} parent=5 // pred_fallthru
        _
      %p422 = scmp.lt.s32.totalorder %s31, 4
      // Predicated region
      $region13: #{tpu_custom_call.1} parent=5 // pred_check
        %p423 = pneg %p422
      $region14: #{tpu_custom_call.1} parent=5 // pred_check_branch
        %425 = sbr.rel (%p423) target = $region16
      $region15: #{tpu_custom_call.1} parent=5 // pred_region
        // Predicated region
        $region17: #{tpu_custom_call.1} parent=15 // pred_check
          %p426 = pneg %p63
        $region18: #{tpu_custom_call.1} parent=15 // pred_check_branch
          %428 = sbr.rel (%p426) target = $region20
        $region19: #{tpu_custom_call.1} parent=15 // pred_region
          %p429 = scmp.lt.s32.totalorder %s38, 1
          %s430 = scalar_select %p429, %s38, 1
          %s431 = smul.addr %s430, 8
          %s432 = scalar_lea.vmem %s1, %s431
        $region20: #{tpu_custom_call.1} parent=15 // pred_fallthru
          _
        // Predicated region
        $region21: #{tpu_custom_call.1} parent=15 // pred_check
          %p433 = pneg %p89
        $region22: #{tpu_custom_call.1} parent=15 // pred_check_branch
          %435 = sbr.rel (%p433) target = $region24
        $region23: #{tpu_custom_call.1} parent=15 // pred_region
          %p436 = scmp.lt.s32.totalorder %s39, 1
          %s437 = scalar_select %p436, %s39, 1
          %s438 = smul.addr %s437, 16
          %s439 = smul.addr %s438, 4
          %s440 = scalar_lea.vmem %s2, %s439
        $region24: #{tpu_custom_call.1} parent=15 // pred_fallthru
          _
        // Predicated region
        $region25: #{tpu_custom_call.1} parent=15 // pred_check
          %p441 = pneg %p115
        $region26: #{tpu_custom_call.1} parent=15 // pred_check_branch
          %443 = sbr.rel (%p441) target = $region28
        $region27: #{tpu_custom_call.1} parent=15 // pred_region
          %p444 = scmp.lt.s32.totalorder %s39, 1
          %s445 = scalar_select %p444, %s39, 1
          %s446 = smul.addr %s445, 16
          %s447 = smul.addr %s446, 4
          %s448 = scalar_lea.vmem %s3, %s447
        $region28: #{tpu_custom_call.1} parent=15 // pred_fallthru
          _
        // Predicated region
        $region29: #{tpu_custom_call.1} parent=15 // pred_check
          %p449 = pneg %p141
        $region30: #{tpu_custom_call.1} parent=15 // pred_check_branch
          %451 = sbr.rel (%p449) target = $region32
        $region31: #{tpu_custom_call.1} parent=15 // pred_region
          %p452 = scmp.lt.s32.totalorder %s39, 1
          %s453 = scalar_select %p452, %s39, 1
          %s454 = smul.addr %s453, 16
          %s455 = smul.addr %s454, 4
          %s456 = scalar_lea.vmem %s4, %s455
        $region32: #{tpu_custom_call.1} parent=15 // pred_fallthru
          _
        // Predicated region
        $region33: #{tpu_custom_call.1} parent=15 // pred_check
          %p457 = pneg %p167
        $region34: #{tpu_custom_call.1} parent=15 // pred_check_branch
          %459 = sbr.rel (%p457) target = $region36
        $region35: #{tpu_custom_call.1} parent=15 // pred_region
          %p460 = scmp.lt.s32.totalorder %s39, 1
          %s461 = scalar_select %p460, %s39, 1
          %s462 = smul.addr %s461, 4
          %s463 = smul.addr %s462, 4
          %s464 = scalar_lea.vmem %s5, %s463
        $region36: #{tpu_custom_call.1} parent=15 // pred_fallthru
          _
        // Predicated region
        $region37: #{tpu_custom_call.1} parent=15 // pred_check
          %p465 = pneg %p193
        $region38: #{tpu_custom_call.1} parent=15 // pred_check_branch
          %467 = sbr.rel (%p465) target = $region40
        $region39: #{tpu_custom_call.1} parent=15 // pred_region
          %p468 = scmp.lt.s32.totalorder %s39, 1
          %s469 = scalar_select %p468, %s39, 1
          %s470 = smul.addr %s469, 4
          %s471 = smul.addr %s470, 4
          %s472 = scalar_lea.vmem %s6, %s471
        $region40: #{tpu_custom_call.1} parent=15 // pred_fallthru
          _
        // Predicated region
        $region41: #{tpu_custom_call.1} parent=15 // pred_check
          %p473 = pneg %p219
        $region42: #{tpu_custom_call.1} parent=15 // pred_check_branch
          %475 = sbr.rel (%p473) target = $region44
        $region43: #{tpu_custom_call.1} parent=15 // pred_region
          %p476 = scmp.lt.s32.totalorder %s39, 1
          %s477 = scalar_select %p476, %s39, 1
          %s478 = scalar_lea.vmem %s7, %s477
        $region44: #{tpu_custom_call.1} parent=15 // pred_fallthru
          _
        // Predicated region
        $region45: #{tpu_custom_call.1} parent=15 // pred_check
          %p479 = pneg %p245
        $region46: #{tpu_custom_call.1} parent=15 // pred_check_branch
          %481 = sbr.rel (%p479) target = $region48
        $region47: #{tpu_custom_call.1} parent=15 // pred_region
          %p482 = scmp.lt.s32.totalorder %s39, 1
          %s483 = scalar_select %p482, %s39, 1
          %s484 = smul.addr %s483, 8
          %s485 = smul.addr %s484, 4
          %s486 = scalar_lea.vmem %s8, %s485
        $region48: #{tpu_custom_call.1} parent=15 // pred_fallthru
          _
        // Predicated region
        $region49: #{tpu_custom_call.1} parent=15 // pred_check
          %p487 = pneg %p271
        $region50: #{tpu_custom_call.1} parent=15 // pred_check_branch
          %489 = sbr.rel (%p487) target = $region52
        $region51: #{tpu_custom_call.1} parent=15 // pred_region
          %p490 = scmp.lt.s32.totalorder %s39, 1
          %s491 = scalar_select %p490, %s39, 1
          %s492 = scalar_lea.vmem %s9, %s491
        $region52: #{tpu_custom_call.1} parent=15 // pred_fallthru
          _
        // Predicated region
        $region53: #{tpu_custom_call.1} parent=15 // pred_check
          %p493 = pneg %p297
        $region54: #{tpu_custom_call.1} parent=15 // pred_check_branch
          %495 = sbr.rel (%p493) target = $region56
        $region55: #{tpu_custom_call.1} parent=15 // pred_region
          %p496 = scmp.lt.s32.totalorder %s39, 1
          %s497 = scalar_select %p496, %s39, 1
          %s498 = scalar_lea.vmem %s10, %s497
        $region56: #{tpu_custom_call.1} parent=15 // pred_fallthru
          _
        // Predicated region
        $region57: #{tpu_custom_call.1} parent=15 // pred_check
          %p499 = pneg %p323
        $region58: #{tpu_custom_call.1} parent=15 // pred_check_branch
          %501 = sbr.rel (%p499) target = $region60
        $region59: #{tpu_custom_call.1} parent=15 // pred_region
          %p502 = scmp.lt.s32.totalorder %s39, 1
          %s503 = scalar_select %p502, %s39, 1
          %s504 = scalar_lea.vmem %s11, %s503
        $region60: #{tpu_custom_call.1} parent=15 // pred_fallthru
          _
        // Predicated region
        $region61: #{tpu_custom_call.1} parent=15 // pred_check
          %p505 = pneg %p349
        $region62: #{tpu_custom_call.1} parent=15 // pred_check_branch
          %507 = sbr.rel (%p505) target = $region64
        $region63: #{tpu_custom_call.1} parent=15 // pred_region
          %p508 = scmp.lt.s32.totalorder %s39, 1
          %s509 = scalar_select %p508, %s39, 1
          %s510 = scalar_lea.vmem %s12, %s509
        $region64: #{tpu_custom_call.1} parent=15 // pred_fallthru
          _
        // Predicated region
        $region65: #{tpu_custom_call.1} parent=15 // pred_check
          %p511 = pneg %p375
        $region66: #{tpu_custom_call.1} parent=15 // pred_check_branch
          %513 = sbr.rel (%p511) target = $region68
        $region67: #{tpu_custom_call.1} parent=15 // pred_region
          %p514 = scmp.lt.s32.totalorder %s39, 1
          %s515 = scalar_select %p514, %s39, 1
          %s516 = scalar_lea.vmem %s13, %s515
        $region68: #{tpu_custom_call.1} parent=15 // pred_fallthru
          _
      $region16: #{tpu_custom_call.1} parent=5 // pred_fallthru
        _
      %p517 = scmp.le.s32.totalorder 1, %s31
      %p518 = scmp.lt.s32.totalorder %s31, 5
      %p519 = pnand %p517, %p518
      %p520 = pneg %p519
      // Predicated region
      $region69: #{tpu_custom_call.1} parent=5 // pred_check
        _
      $region70: #{tpu_custom_call.1} parent=5 // pred_check_branch
        %522 = sbr.rel (%p519) target = $region72
      $region71: #{tpu_custom_call.1} parent=5 // pred_region
        %s523 = ssub.s32 %s31, 1
        %p524 = scmp.lt.s32.totalorder %s40, 1
        %s525 = scalar_select %p524, %s40, 1
        %s526 = smul.addr %s525, 8
        %s527 = scalar_lea.vmem %s1, %s526
        %p528 = pneg %p69
        %p529 = pneg %p66
        %p530 = scmp.lt.s32.totalorder %s41, 1
        %s531 = scalar_select %p530, %s41, 1
        %s532 = smul.addr %s531, 16
        %s533 = smul.addr %s532, 4
        %s534 = scalar_lea.vmem %s2, %s533
        %p535 = pneg %p95
        %p536 = pneg %p92
        %p537 = scmp.lt.s32.totalorder %s41, 1
        %s538 = scalar_select %p537, %s41, 1
        %s539 = smul.addr %s538, 16
        %s540 = smul.addr %s539, 4
        %s541 = scalar_lea.vmem %s3, %s540
        %p542 = pneg %p121
        %p543 = pneg %p118
        %p544 = scmp.lt.s32.totalorder %s41, 1
        %s545 = scalar_select %p544, %s41, 1
        %s546 = smul.addr %s545, 16
        %s547 = smul.addr %s546, 4
        %s548 = scalar_lea.vmem %s4, %s547
        %p549 = pneg %p147
        %p550 = pneg %p144
        %p551 = scmp.lt.s32.totalorder %s41, 1
        %s552 = scalar_select %p551, %s41, 1
        %s553 = smul.addr %s552, 4
        %s554 = smul.addr %s553, 4
        %s555 = scalar_lea.vmem %s5, %s554
        %p556 = pneg %p173
        %p557 = pneg %p170
        %p558 = scmp.lt.s32.totalorder %s41, 1
        %s559 = scalar_select %p558, %s41, 1
        %s560 = smul.addr %s559, 4
        %s561 = smul.addr %s560, 4
        %s562 = scalar_lea.vmem %s6, %s561
        %p563 = pneg %p199
        %p564 = pneg %p196
        %p565 = scmp.lt.s32.totalorder %s41, 1
        %s566 = scalar_select %p565, %s41, 1
        %s567 = scalar_lea.vmem %s7, %s566
        %p568 = pneg %p225
        %p569 = pneg %p222
        %p570 = scmp.lt.s32.totalorder %s41, 1
        %s571 = scalar_select %p570, %s41, 1
        %s572 = smul.addr %s571, 8
        %s573 = smul.addr %s572, 4
        %s574 = scalar_lea.vmem %s8, %s573
        %p575 = pneg %p251
        %p576 = pneg %p248
        %p577 = scmp.lt.s32.totalorder %s41, 1
        %s578 = scalar_select %p577, %s41, 1
        %s579 = scalar_lea.vmem %s9, %s578
        %p580 = pneg %p277
        %p581 = pneg %p274
        %p582 = scmp.lt.s32.totalorder %s41, 1
        %s583 = scalar_select %p582, %s41, 1
        %s584 = scalar_lea.vmem %s10, %s583
        %p585 = pneg %p303
        %p586 = pneg %p300
        %p587 = scmp.lt.s32.totalorder %s41, 1
        %s588 = scalar_select %p587, %s41, 1
        %s589 = scalar_lea.vmem %s11, %s588
        %p590 = pneg %p329
        %p591 = pneg %p326
        %p592 = scmp.lt.s32.totalorder %s41, 1
        %s593 = scalar_select %p592, %s41, 1
        %s594 = scalar_lea.vmem %s12, %s593
        %p595 = pneg %p355
        %p596 = pneg %p352
        %p597 = scmp.lt.s32.totalorder %s41, 1
        %s598 = scalar_select %p597, %s41, 1
        %s599 = scalar_lea.vmem %s13, %s598
        %p600 = pneg %p381
        %p601 = pneg %p378
        %p602 = pneg %p407
        %p603 = pneg %p404
        %s604 = sand.u32 %s394, 1
        %s605 = scalar_lea.sflag [#allocation6], %s604
        %s606 = sand.u32 %s394, 1
        %s607 = smul.addr %s606, 4
        %s608 = scalar_lea.vmem [#allocation5], %s607
        %p609 = scmp.lt.s32.totalorder %s40, 1
        %s610 = scalar_select %p609, %s40, 1
        %s611 = smul.addr %s610, 8
        %s612 = scalar_lea.vmem %s1, %s611
        %p613 = scmp.lt.s32.totalorder %s41, 1
        %s614 = scalar_select %p613, %s41, 1
        %s615 = smul.addr %s614, 16
        %s616 = smul.addr %s615, 4
        %s617 = scalar_lea.vmem %s2, %s616
        %p618 = scmp.lt.s32.totalorder %s41, 1
        %s619 = scalar_select %p618, %s41, 1
        %s620 = smul.addr %s619, 16
        %s621 = smul.addr %s620, 4
        %s622 = scalar_lea.vmem %s3, %s621
        %p623 = scmp.lt.s32.totalorder %s41, 1
        %s624 = scalar_select %p623, %s41, 1
        %s625 = smul.addr %s624, 16
        %s626 = smul.addr %s625, 4
        %s627 = scalar_lea.vmem %s4, %s626
        %p628 = scmp.lt.s32.totalorder %s41, 1
        %s629 = scalar_select %p628, %s41, 1
        %s630 = smul.addr %s629, 4
        %s631 = smul.addr %s630, 4
        %s632 = scalar_lea.vmem %s5, %s631
        %p633 = scmp.lt.s32.totalorder %s41, 1
        %s634 = scalar_select %p633, %s41, 1
        %s635 = smul.addr %s634, 4
        %s636 = smul.addr %s635, 4
        %s637 = scalar_lea.vmem %s6, %s636
        %p638 = scmp.lt.s32.totalorder %s41, 1
        %s639 = scalar_select %p638, %s41, 1
        %s640 = scalar_lea.vmem %s7, %s639
        %p641 = scmp.lt.s32.totalorder %s41, 1
        %s642 = scalar_select %p641, %s41, 1
        %s643 = smul.addr %s642, 8
        %s644 = smul.addr %s643, 4
        %s645 = scalar_lea.vmem %s8, %s644
        %p646 = scmp.lt.s32.totalorder %s41, 1
        %s647 = scalar_select %p646, %s41, 1
        %s648 = scalar_lea.vmem %s9, %s647
        %p649 = scmp.lt.s32.totalorder %s41, 1
        %s650 = scalar_select %p649, %s41, 1
        %s651 = scalar_lea.vmem %s10, %s650
        %p652 = scmp.lt.s32.totalorder %s41, 1
        %s653 = scalar_select %p652, %s41, 1
        %s654 = scalar_lea.vmem %s11, %s653
        %p655 = scmp.lt.s32.totalorder %s41, 1
        %s656 = scalar_select %p655, %s41, 1
        %s657 = scalar_lea.vmem %s12, %s656
        %p658 = scmp.lt.s32.totalorder %s41, 1
        %s659 = scalar_select %p658, %s41, 1
        %s660 = scalar_lea.vmem %s13, %s659
        %p662 = scmp.eq.s32.totalorder %s41, 0
        // Predicated region
        $region73: #{tpu_custom_call.1} parent=71 // pred_check
          %p663 = pneg %p662
        $region74: #{tpu_custom_call.1} parent=71 // pred_check_branch
          %665 = sbr.rel (%p663) target = $region76
        $region75: #{tpu_custom_call.1} parent=71 // pred_region
          %v666 = vld [vmem:[%s612] sm:$0xff]
          %vm667 = vcmask 261120
          %668 = vst.msk [vmem:[#allocation2] sm:$0xff] %vm667, %v666
        $region76: #{tpu_custom_call.1} parent=71 // pred_fallthru
          _
        %v669 = vld [vmem:[#allocation2] sm:$0xff]
        %v670 = vlaneseq
        %v671 = vand.u32 %v670, 127
        %s672 = sld [smem:[#allocation4 + %s40]]
        %v673 = vstv %s672
        %vm674 = vcmp.lt.s32.totalorder %v671, %v673
        %v675 = vpack.c.bf16 %v669, %v669
        %v676 = vld [vmem:[%s617] sm:$0xf]
        %v677 = vld [vmem:[%s617 + $0x4] sm:$0xf]
        %v678 = vld [vmem:[%s617 + $0x8] sm:$0xf]
        %v679 = vld [vmem:[%s617 + $0xc] sm:$0xf]
        %v680 = vld [vmem:[%s617 + $0x10] sm:$0xf]
        %v681 = vld [vmem:[%s617 + $0x14] sm:$0xf]
        %v682 = vld [vmem:[%s617 + $0x18] sm:$0xf]
        %v683 = vld [vmem:[%s617 + $0x1c] sm:$0xf]
        %v684 = vld [vmem:[%s617 + $0x20] sm:$0xf]
        %v685 = vld [vmem:[%s617 + $0x24] sm:$0xf]
        %v686 = vld [vmem:[%s617 + $0x28] sm:$0xf]
        %v687 = vld [vmem:[%s617 + $0x2c] sm:$0xf]
        %v688 = vld [vmem:[%s617 + $0x30] sm:$0xf]
        %v689 = vld [vmem:[%s617 + $0x34] sm:$0xf]
        %v690 = vld [vmem:[%s617 + $0x38] sm:$0xf]
        %v691 = vld [vmem:[%s617 + $0x3c] sm:$0xf]
        %v692 = vld [vmem:[%s622] sm:$0xf]
        %v693 = vld [vmem:[%s622 + $0x4] sm:$0xf]
        %v694 = vld [vmem:[%s622 + $0x8] sm:$0xf]
        %v695 = vld [vmem:[%s622 + $0xc] sm:$0xf]
        %v696 = vld [vmem:[%s622 + $0x10] sm:$0xf]
        %v697 = vld [vmem:[%s622 + $0x14] sm:$0xf]
        %v698 = vld [vmem:[%s622 + $0x18] sm:$0xf]
        %v699 = vld [vmem:[%s622 + $0x1c] sm:$0xf]
        %v700 = vld [vmem:[%s622 + $0x20] sm:$0xf]
        %v701 = vld [vmem:[%s622 + $0x24] sm:$0xf]
        %v702 = vld [vmem:[%s622 + $0x28] sm:$0xf]
        %v703 = vld [vmem:[%s622 + $0x2c] sm:$0xf]
        %v704 = vld [vmem:[%s622 + $0x30] sm:$0xf]
        %v705 = vld [vmem:[%s622 + $0x34] sm:$0xf]
        %v706 = vld [vmem:[%s622 + $0x38] sm:$0xf]
        %v707 = vld [vmem:[%s622 + $0x3c] sm:$0xf]
        %v708 = vld [vmem:[%s627] sm:$0xf]
        %v709 = vld [vmem:[%s627 + $0x4] sm:$0xf]
        %v710 = vld [vmem:[%s627 + $0x8] sm:$0xf]
        %v711 = vld [vmem:[%s627 + $0xc] sm:$0xf]
        %v712 = vld [vmem:[%s627 + $0x10] sm:$0xf]
        %v713 = vld [vmem:[%s627 + $0x14] sm:$0xf]
        %v714 = vld [vmem:[%s627 + $0x18] sm:$0xf]
        %v715 = vld [vmem:[%s627 + $0x1c] sm:$0xf]
        %v716 = vld [vmem:[%s627 + $0x20] sm:$0xf]
        %v717 = vld [vmem:[%s627 + $0x24] sm:$0xf]
        %v718 = vld [vmem:[%s627 + $0x28] sm:$0xf]
        %v719 = vld [vmem:[%s627 + $0x2c] sm:$0xf]
        %v720 = vld [vmem:[%s627 + $0x30] sm:$0xf]
        %v721 = vld [vmem:[%s627 + $0x34] sm:$0xf]
        %v722 = vld [vmem:[%s627 + $0x38] sm:$0xf]
        %v723 = vld [vmem:[%s627 + $0x3c] sm:$0xf]
        %v724 = vld [vmem:[%s632] sm:$0xf]
        %v725 = vld [vmem:[%s632 + $0x4] sm:$0xf]
        %v726 = vld [vmem:[%s632 + $0x8] sm:$0xf]
        %v727 = vld [vmem:[%s632 + $0xc] sm:$0xf]
        %v732 = vunpack.c.l.b16 %v676
        %v733 = vunpack.c.l.b16 %v677
        %v734 = vunpack.c.l.b16 %v678
        %v735 = vunpack.c.l.b16 %v679
        %v736 = vpack.c.b16 %v733, %v732
        %v737 = vpack.c.b16 %v735, %v734
        %vm740 = vcmask 261120
        %v742 = vsel %vm740, %v675, 0
        %744 = vmatpush.bf16.msra.mxu0 0
        %745 = vmatpush.bf16.msra.mxu0 0
        %746 = vmatpush.bf16.msra.mxu0 0
        %747 = vmatpush.bf16.msra.mxu0 0
        %748 = vmatpush.bf16.msra.mxu0 0
        %749 = vmatpush.bf16.msra.mxu0 0
        %750 = vmatpush.bf16.msra.mxu0 %v737
        %751 = vmatpush.bf16.msra.mxu0 %v736
        %752 = vmatmul.bf16.gmra.mxu0 %v742
        %v753 = vpop.f32.mrf.mxu0
        %v754 = vadd.f32 0.0, %v753
        %v755 = vpop.f32.mrf.mxu0
        %756 = vdwg.mxu0
        %v761 = vunpack.c.l.b16 %v680
        %v762 = vunpack.c.l.b16 %v681
        %v763 = vunpack.c.l.b16 %v682
        %v764 = vunpack.c.l.b16 %v683
        %v765 = vpack.c.b16 %v762, %v761
        %v766 = vpack.c.b16 %v764, %v763
        %769 = vmatpush.bf16.msra.mxu0 0
        %770 = vmatpush.bf16.msra.mxu0 0
        %771 = vmatpush.bf16.msra.mxu0 0
        %772 = vmatpush.bf16.msra.mxu0 0
        %773 = vmatpush.bf16.msra.mxu0 0
        %774 = vmatpush.bf16.msra.mxu0 0
        %775 = vmatpush.bf16.msra.mxu0 %v766
        %776 = vmatpush.bf16.msra.mxu0 %v765
        %777 = vmatmul.bf16.gmra.mxu0 %v742
        %v778 = vpop.f32.mrf.mxu0
        %v779 = vadd.f32 0.0, %v778
        %v780 = vpop.f32.mrf.mxu0
        %781 = vdwg.mxu0
        %v786 = vunpack.c.l.b16 %v684
        %v787 = vunpack.c.l.b16 %v685
        %v788 = vunpack.c.l.b16 %v686
        %v789 = vunpack.c.l.b16 %v687
        %v790 = vpack.c.b16 %v787, %v786
        %v791 = vpack.c.b16 %v789, %v788
        %794 = vmatpush.bf16.msra.mxu0 0
        %795 = vmatpush.bf16.msra.mxu0 0
        %796 = vmatpush.bf16.msra.mxu0 0
        %797 = vmatpush.bf16.msra.mxu0 0
        %798 = vmatpush.bf16.msra.mxu0 0
        %799 = vmatpush.bf16.msra.mxu0 0
        %800 = vmatpush.bf16.msra.mxu0 %v791
        %801 = vmatpush.bf16.msra.mxu0 %v790
        %802 = vmatmul.bf16.gmra.mxu0 %v742
        %v803 = vpop.f32.mrf.mxu0
        %v804 = vadd.f32 0.0, %v803
        %v805 = vpop.f32.mrf.mxu0
        %806 = vdwg.mxu0
        %v811 = vunpack.c.l.b16 %v688
        %v812 = vunpack.c.l.b16 %v689
        %v813 = vunpack.c.l.b16 %v690
        %v814 = vunpack.c.l.b16 %v691
        %v815 = vpack.c.b16 %v812, %v811
        %v816 = vpack.c.b16 %v814, %v813
        %819 = vmatpush.bf16.msra.mxu0 0
        %820 = vmatpush.bf16.msra.mxu0 0
        %821 = vmatpush.bf16.msra.mxu0 0
        %822 = vmatpush.bf16.msra.mxu0 0
        %823 = vmatpush.bf16.msra.mxu0 0
        %824 = vmatpush.bf16.msra.mxu0 0
        %825 = vmatpush.bf16.msra.mxu0 %v816
        %826 = vmatpush.bf16.msra.mxu0 %v815
        %827 = vmatmul.bf16.gmra.mxu0 %v742
        %v828 = vpop.f32.mrf.mxu0
        %v829 = vadd.f32 0.0, %v828
        %v830 = vpop.f32.mrf.mxu0
        %831 = vdwg.mxu0
        %v836 = vunpack.c.l.b16 %v692
        %v837 = vunpack.c.l.b16 %v693
        %v838 = vunpack.c.l.b16 %v694
        %v839 = vunpack.c.l.b16 %v695
        %v840 = vpack.c.b16 %v837, %v836
        %v841 = vpack.c.b16 %v839, %v838
        %844 = vmatpush.bf16.msra.mxu0 0
        %845 = vmatpush.bf16.msra.mxu0 0
        %846 = vmatpush.bf16.msra.mxu0 0
        %847 = vmatpush.bf16.msra.mxu0 0
        %848 = vmatpush.bf16.msra.mxu0 0
        %849 = vmatpush.bf16.msra.mxu0 0
        %850 = vmatpush.bf16.msra.mxu0 %v841
        %851 = vmatpush.bf16.msra.mxu0 %v840
        %852 = vmatmul.bf16.gmra.mxu0 %v742
        %v853 = vpop.f32.mrf.mxu0
        %v854 = vadd.f32 0.0, %v853
        %v855 = vpop.f32.mrf.mxu0
        %856 = vdwg.mxu0
        %v861 = vunpack.c.l.b16 %v696
        %v862 = vunpack.c.l.b16 %v697
        %v863 = vunpack.c.l.b16 %v698
        %v864 = vunpack.c.l.b16 %v699
        %v865 = vpack.c.b16 %v862, %v861
        %v866 = vpack.c.b16 %v864, %v863
        %869 = vmatpush.bf16.msra.mxu0 0
        %870 = vmatpush.bf16.msra.mxu0 0
        %871 = vmatpush.bf16.msra.mxu0 0
        %872 = vmatpush.bf16.msra.mxu0 0
        %873 = vmatpush.bf16.msra.mxu0 0
        %874 = vmatpush.bf16.msra.mxu0 0
        %875 = vmatpush.bf16.msra.mxu0 %v866
        %876 = vmatpush.bf16.msra.mxu0 %v865
        %877 = vmatmul.bf16.gmra.mxu0 %v742
        %v878 = vpop.f32.mrf.mxu0
        %v879 = vadd.f32 0.0, %v878
        %v880 = vpop.f32.mrf.mxu0
        %881 = vdwg.mxu0
        %v886 = vunpack.c.l.b16 %v700
        %v887 = vunpack.c.l.b16 %v701
        %v888 = vunpack.c.l.b16 %v702
        %v889 = vunpack.c.l.b16 %v703
        %v890 = vpack.c.b16 %v887, %v886
        %v891 = vpack.c.b16 %v889, %v888
        %894 = vmatpush.bf16.msra.mxu0 0
        %895 = vmatpush.bf16.msra.mxu0 0
        %896 = vmatpush.bf16.msra.mxu0 0
        %897 = vmatpush.bf16.msra.mxu0 0
        %898 = vmatpush.bf16.msra.mxu0 0
        %899 = vmatpush.bf16.msra.mxu0 0
        %900 = vmatpush.bf16.msra.mxu0 %v891
        %901 = vmatpush.bf16.msra.mxu0 %v890
        %902 = vmatmul.bf16.gmra.mxu0 %v742
        %v903 = vpop.f32.mrf.mxu0
        %v904 = vadd.f32 0.0, %v903
        %v905 = vpop.f32.mrf.mxu0
        %906 = vdwg.mxu0
        %v911 = vunpack.c.l.b16 %v704
        %v912 = vunpack.c.l.b16 %v705
        %v913 = vunpack.c.l.b16 %v706
        %v914 = vunpack.c.l.b16 %v707
        %v915 = vpack.c.b16 %v912, %v911
        %v916 = vpack.c.b16 %v914, %v913
        %919 = vmatpush.bf16.msra.mxu0 0
        %920 = vmatpush.bf16.msra.mxu0 0
        %921 = vmatpush.bf16.msra.mxu0 0
        %922 = vmatpush.bf16.msra.mxu0 0
        %923 = vmatpush.bf16.msra.mxu0 0
        %924 = vmatpush.bf16.msra.mxu0 0
        %925 = vmatpush.bf16.msra.mxu0 %v916
        %926 = vmatpush.bf16.msra.mxu0 %v915
        %927 = vmatmul.bf16.gmra.mxu0 %v742
        %v928 = vpop.f32.mrf.mxu0
        %v929 = vadd.f32 0.0, %v928
        %v930 = vpop.f32.mrf.mxu0
        %931 = vdwg.mxu0
        %v936 = vunpack.c.l.b16 %v708
        %v937 = vunpack.c.l.b16 %v709
        %v938 = vunpack.c.l.b16 %v710
        %v939 = vunpack.c.l.b16 %v711
        %v940 = vpack.c.b16 %v937, %v936
        %v941 = vpack.c.b16 %v939, %v938
        %944 = vmatpush.bf16.msra.mxu0 0
        %945 = vmatpush.bf16.msra.mxu0 0
        %946 = vmatpush.bf16.msra.mxu0 0
        %947 = vmatpush.bf16.msra.mxu0 0
        %948 = vmatpush.bf16.msra.mxu0 0
        %949 = vmatpush.bf16.msra.mxu0 0
        %950 = vmatpush.bf16.msra.mxu0 %v941
        %951 = vmatpush.bf16.msra.mxu0 %v940
        %952 = vmatmul.bf16.gmra.mxu0 %v742
        %v953 = vpop.f32.mrf.mxu0
        %v954 = vadd.f32 0.0, %v953
        %v955 = vpop.f32.mrf.mxu0
        %956 = vdwg.mxu0
        %v961 = vunpack.c.l.b16 %v712
        %v962 = vunpack.c.l.b16 %v713
        %v963 = vunpack.c.l.b16 %v714
        %v964 = vunpack.c.l.b16 %v715
        %v965 = vpack.c.b16 %v962, %v961
        %v966 = vpack.c.b16 %v964, %v963
        %969 = vmatpush.bf16.msra.mxu0 0
        %970 = vmatpush.bf16.msra.mxu0 0
        %971 = vmatpush.bf16.msra.mxu0 0
        %972 = vmatpush.bf16.msra.mxu0 0
        %973 = vmatpush.bf16.msra.mxu0 0
        %974 = vmatpush.bf16.msra.mxu0 0
        %975 = vmatpush.bf16.msra.mxu0 %v966
        %976 = vmatpush.bf16.msra.mxu0 %v965
        %977 = vmatmul.bf16.gmra.mxu0 %v742
        %v978 = vpop.f32.mrf.mxu0
        %v979 = vadd.f32 0.0, %v978
        %v980 = vpop.f32.mrf.mxu0
        %981 = vdwg.mxu0
        %v986 = vunpack.c.l.b16 %v716
        %v987 = vunpack.c.l.b16 %v717
        %v988 = vunpack.c.l.b16 %v718
        %v989 = vunpack.c.l.b16 %v719
        %v990 = vpack.c.b16 %v987, %v986
        %v991 = vpack.c.b16 %v989, %v988
        %994 = vmatpush.bf16.msra.mxu0 0
        %995 = vmatpush.bf16.msra.mxu0 0
        %996 = vmatpush.bf16.msra.mxu0 0
        %997 = vmatpush.bf16.msra.mxu0 0
        %998 = vmatpush.bf16.msra.mxu0 0
        %999 = vmatpush.bf16.msra.mxu0 0
        %1000 = vmatpush.bf16.msra.mxu0 %v991
        %1001 = vmatpush.bf16.msra.mxu0 %v990
        %1002 = vmatmul.bf16.gmra.mxu0 %v742
        %v1003 = vpop.f32.mrf.mxu0
        %v1004 = vadd.f32 0.0, %v1003
        %v1005 = vpop.f32.mrf.mxu0
        %1006 = vdwg.mxu0
        %v1011 = vunpack.c.l.b16 %v720
        %v1012 = vunpack.c.l.b16 %v721
        %v1013 = vunpack.c.l.b16 %v722
        %v1014 = vunpack.c.l.b16 %v723
        %v1015 = vpack.c.b16 %v1012, %v1011
        %v1016 = vpack.c.b16 %v1014, %v1013
        %1019 = vmatpush.bf16.msra.mxu0 0
        %1020 = vmatpush.bf16.msra.mxu0 0
        %1021 = vmatpush.bf16.msra.mxu0 0
        %1022 = vmatpush.bf16.msra.mxu0 0
        %1023 = vmatpush.bf16.msra.mxu0 0
        %1024 = vmatpush.bf16.msra.mxu0 0
        %1025 = vmatpush.bf16.msra.mxu0 %v1016
        %1026 = vmatpush.bf16.msra.mxu0 %v1015
        %1027 = vmatmul.bf16.gmra.mxu0 %v742
        %v1028 = vpop.f32.mrf.mxu0
        %v1029 = vadd.f32 0.0, %v1028
        %v1030 = vpop.f32.mrf.mxu0
        %1031 = vdwg.mxu0
        %v1032 = vpack.c.bf16 %v754, %v754
        %v1033 = vpack.c.bf16 %v779, %v779
        %v1034 = vpack.c.bf16 %v804, %v804
        %v1035 = vpack.c.bf16 %v829, %v829
        %v1036 = vpack.c.bf16 %v854, %v854
        %v1037 = vpack.c.bf16 %v879, %v879
        %v1038 = vpack.c.bf16 %v904, %v904
        %v1039 = vpack.c.bf16 %v929, %v929
        %vm1040 = vcmask 64512
        %v1042 = vsel %vm1040, %v1032, 0
        %v1045 = vsel %vm1040, %v1036, 0
        %1047 = vmatpush.bf16.xpose.msra.mxu0 0
        %1048 = vmatpush.bf16.xpose.msra.mxu0 0
        %1049 = vmatpush.bf16.xpose.msra.mxu0 0
        %1050 = vmatpush.bf16.xpose.msra.mxu0 0
        %1051 = vmatpush.bf16.xpose.msra.mxu0 0
        %1052 = vmatpush.bf16.xpose.msra.mxu0 0
        %1053 = vmatpush.bf16.xpose.msra.mxu0 0
        %1054 = vmatpush.bf16.xpose.msra.mxu0 %v1045
        %1055 = vmatmul.bf16.gmra.mxu0 %v1042
        %v1056 = vpop.f32.mrf.mxu0
        %v1057 = vadd.f32 0.0, %v1056
        %v1058 = vpop.f32.mrf.mxu0
        %1059 = vdwg.mxu0
        %v1061 = vsel %vm1040, %v1033, 0
        %v1064 = vsel %vm1040, %v1037, 0
        %1066 = vmatpush.bf16.xpose.msra.mxu0 0
        %1067 = vmatpush.bf16.xpose.msra.mxu0 0
        %1068 = vmatpush.bf16.xpose.msra.mxu0 0
        %1069 = vmatpush.bf16.xpose.msra.mxu0 0
        %1070 = vmatpush.bf16.xpose.msra.mxu0 0
        %1071 = vmatpush.bf16.xpose.msra.mxu0 0
        %1072 = vmatpush.bf16.xpose.msra.mxu0 0
        %1073 = vmatpush.bf16.xpose.msra.mxu0 %v1064
        %1074 = vmatmul.bf16.gmra.mxu0 %v1061
        %v1075 = vpop.f32.mrf.mxu0
        %v1076 = vadd.f32 0.0, %v1075
        %v1077 = vpop.f32.mrf.mxu0
        %1078 = vdwg.mxu0
        %v1080 = vsel %vm1040, %v1034, 0
        %v1083 = vsel %vm1040, %v1038, 0
        %1085 = vmatpush.bf16.xpose.msra.mxu0 0
        %1086 = vmatpush.bf16.xpose.msra.mxu0 0
        %1087 = vmatpush.bf16.xpose.msra.mxu0 0
        %1088 = vmatpush.bf16.xpose.msra.mxu0 0
        %1089 = vmatpush.bf16.xpose.msra.mxu0 0
        %1090 = vmatpush.bf16.xpose.msra.mxu0 0
        %1091 = vmatpush.bf16.xpose.msra.mxu0 0
        %1092 = vmatpush.bf16.xpose.msra.mxu0 %v1083
        %1093 = vmatmul.bf16.gmra.mxu0 %v1080
        %v1094 = vpop.f32.mrf.mxu0
        %v1095 = vadd.f32 0.0, %v1094
        %v1096 = vpop.f32.mrf.mxu0
        %1097 = vdwg.mxu0
        %v1099 = vsel %vm1040, %v1035, 0
        %v1102 = vsel %vm1040, %v1039, 0
        %1104 = vmatpush.bf16.xpose.msra.mxu0 0
        %1105 = vmatpush.bf16.xpose.msra.mxu0 0
        %1106 = vmatpush.bf16.xpose.msra.mxu0 0
        %1107 = vmatpush.bf16.xpose.msra.mxu0 0
        %1108 = vmatpush.bf16.xpose.msra.mxu0 0
        %1109 = vmatpush.bf16.xpose.msra.mxu0 0
        %1110 = vmatpush.bf16.xpose.msra.mxu0 0
        %1111 = vmatpush.bf16.xpose.msra.mxu0 %v1102
        %1112 = vmatmul.bf16.gmra.mxu0 %v1099
        %v1113 = vpop.f32.mrf.mxu0
        %v1114 = vadd.f32 0.0, %v1113
        %v1115 = vpop.f32.mrf.mxu0
        %1116 = vdwg.mxu0
        %v1117 = vmul.f32 %v1057, 0.35355338
        %v1118 = vmul.f32 %v1076, 0.35355338
        %v1119 = vmul.f32 %v1095, 0.35355338
        %v1120 = vmul.f32 %v1114, 0.35355338
        %v1121 = vsel %vm674, 1, 0
        %vm1122 = vcmp.eq.s32.totalorder %v1121, 1
        %v1123 = vsel %vm1122, %v1117, 1e-06
        %v1124 = vsel %vm1122, %v1118, 1e-06
        %v1125 = vsel %vm1122, %v1119, 1e-06
        %v1126 = vsel %vm1122, %v1120, 1e-06
        %v1127 = vsel %vm1040, %v1123, -inf
        %1128 = vmax.xlane.f32.xlu0 %v1127
        %v1129 = vpop.xlane.xlu0 %1128
        %v1130 = vsel %vm1040, %v1124, -inf
        %1131 = vmax.xlane.f32.xlu0 %v1130
        %v1132 = vpop.xlane.xlu0 %1131
        %v1133 = vsel %vm1040, %v1125, -inf
        %1134 = vmax.xlane.f32.xlu0 %v1133
        %v1135 = vpop.xlane.xlu0 %1134
        %v1136 = vsel %vm1040, %v1126, -inf
        %1137 = vmax.xlane.f32.xlu0 %v1136
        %v1138 = vpop.xlane.xlu0 %1137
        %v1139 = vsub.f32 %v1123, %v1129
        %v1140 = vsub.f32 %v1124, %v1132
        %v1141 = vsub.f32 %v1125, %v1135
        %v1142 = vsub.f32 %v1126, %v1138
        %v1143 = vmul.f32 %v1139, 1.442695
        %v1144 = vpow.pop %v1143
        %v1145 = vmul.f32 %v1140, 1.442695
        %v1146 = vpow.pop %v1145
        %v1147 = vmul.f32 %v1141, 1.442695
        %v1148 = vpow.pop %v1147
        %v1149 = vmul.f32 %v1142, 1.442695
        %v1150 = vpow.pop %v1149
        %v1151 = vsel %vm1040, %v1144, 0.0
        %1152 = vadd.xlane.f32.xlu0 %v1151
        %v1153 = vpop.xlane.xlu0 %1152
        %v1154 = vsel %vm1040, %v1146, 0.0
        %1155 = vadd.xlane.f32.xlu0 %v1154
        %v1156 = vpop.xlane.xlu0 %1155
        %v1157 = vsel %vm1040, %v1148, 0.0
        %1158 = vadd.xlane.f32.xlu0 %v1157
        %v1159 = vpop.xlane.xlu0 %1158
        %v1160 = vsel %vm1040, %v1150, 0.0
        %1161 = vadd.xlane.f32.xlu0 %v1160
        %v1162 = vpop.xlane.xlu0 %1161
        %v1163 = vrcp.pop %v1153
        %v1164 = vrcp.pop %v1156
        %v1165 = vrcp.pop %v1159
        %v1166 = vrcp.pop %v1162
        %v1167 = vmul.f32 %v1144, %v1163
        %v1168 = vmul.f32 %v1146, %v1164
        %v1169 = vmul.f32 %v1148, %v1165
        %v1170 = vmul.f32 %v1150, %v1166
        %v1171 = vpack.c.bf16 %v1167, %v1167
        %v1172 = vpack.c.bf16 %v1168, %v1168
        %v1173 = vpack.c.bf16 %v1169, %v1169
        %v1174 = vpack.c.bf16 %v1170, %v1170
        %v1175 = vpack.c.bf16 %v954, %v954
        %v1176 = vpack.c.bf16 %v979, %v979
        %v1177 = vpack.c.bf16 %v1004, %v1004
        %v1178 = vpack.c.bf16 %v1029, %v1029
        %v1180 = vsel %vm1040, %v1171, 0
        %vm1182 = vcmask 1043456
        %v1184 = vsel %vm1182, %v1175, 0
        %1186 = vmatpush.bf16.msra.mxu0 0
        %1187 = vmatpush.bf16.msra.mxu0 0
        %1188 = vmatpush.bf16.msra.mxu0 0
        %1189 = vmatpush.bf16.msra.mxu0 0
        %1190 = vmatpush.bf16.msra.mxu0 0
        %1191 = vmatpush.bf16.msra.mxu0 0
        %1192 = vmatpush.bf16.msra.mxu0 0
        %1193 = vmatpush.bf16.msra.mxu0 %v1184
        %1194 = vmatmul.bf16.gmra.mxu0 %v1180
        %v1195 = vpop.f32.mrf.mxu0
        %v1196 = vadd.f32 0.0, %v1195
        %v1197 = vpop.f32.mrf.mxu0
        %1198 = vdwg.mxu0
        %v1200 = vsel %vm1040, %v1172, 0
        %v1203 = vsel %vm1182, %v1176, 0
        %1205 = vmatpush.bf16.msra.mxu0 0
        %1206 = vmatpush.bf16.msra.mxu0 0
        %1207 = vmatpush.bf16.msra.mxu0 0
        %1208 = vmatpush.bf16.msra.mxu0 0
        %1209 = vmatpush.bf16.msra.mxu0 0
        %1210 = vmatpush.bf16.msra.mxu0 0
        %1211 = vmatpush.bf16.msra.mxu0 0
        %1212 = vmatpush.bf16.msra.mxu0 %v1203
        %1213 = vmatmul.bf16.gmra.mxu0 %v1200
        %v1214 = vpop.f32.mrf.mxu0
        %v1215 = vadd.f32 0.0, %v1214
        %v1216 = vpop.f32.mrf.mxu0
        %1217 = vdwg.mxu0
        %v1219 = vsel %vm1040, %v1173, 0
        %v1222 = vsel %vm1182, %v1177, 0
        %1224 = vmatpush.bf16.msra.mxu0 0
        %1225 = vmatpush.bf16.msra.mxu0 0
        %1226 = vmatpush.bf16.msra.mxu0 0
        %1227 = vmatpush.bf16.msra.mxu0 0
        %1228 = vmatpush.bf16.msra.mxu0 0
        %1229 = vmatpush.bf16.msra.mxu0 0
        %1230 = vmatpush.bf16.msra.mxu0 0
        %1231 = vmatpush.bf16.msra.mxu0 %v1222
        %1232 = vmatmul.bf16.gmra.mxu0 %v1219
        %v1233 = vpop.f32.mrf.mxu0
        %v1234 = vadd.f32 0.0, %v1233
        %v1235 = vpop.f32.mrf.mxu0
        %1236 = vdwg.mxu0
        %v1238 = vsel %vm1040, %v1174, 0
        %v1241 = vsel %vm1182, %v1178, 0
        %1243 = vmatpush.bf16.msra.mxu0 0
        %1244 = vmatpush.bf16.msra.mxu0 0
        %1245 = vmatpush.bf16.msra.mxu0 0
        %1246 = vmatpush.bf16.msra.mxu0 0
        %1247 = vmatpush.bf16.msra.mxu0 0
        %1248 = vmatpush.bf16.msra.mxu0 0
        %1249 = vmatpush.bf16.msra.mxu0 0
        %1250 = vmatpush.bf16.msra.mxu0 %v1241
        %1251 = vmatmul.bf16.gmra.mxu0 %v1238
        %v1252 = vpop.f32.mrf.mxu0
        %v1253 = vadd.f32 0.0, %v1252
        %v1254 = vpop.f32.mrf.mxu0
        %1255 = vdwg.mxu0
        %1257 = vrot.lane.b32.xlu0 %v1215, 8
        %v1258 = vpop.permute.xlu0 %1257
        %1261 = vrot.lane.b32.xlu0 %v1234, 16
        %v1262 = vpop.permute.xlu0 %1261
        %1265 = vrot.lane.b32.xlu0 %v1253, 24
        %v1266 = vpop.permute.xlu0 %1265
        %v1268 = vsel %vm1040, %v1196, %v1258
        %vm1269 = vcmask 130048
        %v1270 = vsel %vm1269, %v1268, %v1262
        %vm1271 = vcmask 195584
        %v1272 = vsel %vm1271, %v1270, %v1266
        %v1273 = vpack.c.bf16 %v1272, %v1272
        %v1278 = vunpack.c.l.b16 %v724
        %v1279 = vunpack.c.l.b16 %v725
        %v1280 = vunpack.c.l.b16 %v726
        %v1281 = vunpack.c.l.b16 %v727
        %v1282 = vpack.c.b16 %v1279, %v1278
        %v1283 = vpack.c.b16 %v1281, %v1280
        %v1287 = vsel %vm740, %v1273, 0
        %1289 = vmatpush.bf16.msra.mxu0 0
        %1290 = vmatpush.bf16.msra.mxu0 0
        %1291 = vmatpush.bf16.msra.mxu0 0
        %1292 = vmatpush.bf16.msra.mxu0 0
        %1293 = vmatpush.bf16.msra.mxu0 0
        %1294 = vmatpush.bf16.msra.mxu0 0
        %1295 = vmatpush.bf16.msra.mxu0 %v1283
        %1296 = vmatpush.bf16.msra.mxu0 %v1282
        %1297 = vmatmul.bf16.gmra.mxu0 %v1287
        %v1298 = vpop.f32.mrf.mxu0
        %v1299 = vadd.f32 0.0, %v1298
        %v1300 = vpop.f32.mrf.mxu0
        %1301 = vdwg.mxu0
        %v1302 = vld [vmem:[%s651] sm:$0x1]
        %v1303 = vld [vmem:[%s654] sm:$0x1]
        %v1304 = vadd.f32 %v669, %v1299
        %v1305 = vsel %vm740, %v1304, 0.0
        %1306 = vadd.xlane.f32.xlu0 %v1305
        %v1307 = vpop.xlane.xlu0 %1306
        %v1308 = vrcp.pop 32.0
        %v1309 = vmul.f32 32.0, %v1308
        %v1310 = vsub.f32 1.0, %v1309
        %v1311 = vmul.f32 %v1308, %v1310
        %v1312 = vadd.f32 %v1308, %v1311
        %vm1313 = vweird.f32 %v1308
        %v1314 = vsel %vm1313, %v1308, %v1312
        %v1315 = vmul.f32 %v1307, %v1314
        %v1316 = vsub.f32 %v1304, %v1315
        %v1317 = vmul.f32 %v1316, %v1316
        %v1318 = vsel %vm740, %v1317, 0.0
        %1319 = vadd.xlane.f32.xlu0 %v1318
        %v1320 = vpop.xlane.xlu0 %1319
        %v1321 = vmul.f32 %v1320, %v1314
        %v1322 = vadd.f32 %v1321, 1e-12
        %v1323 = vrsqrt.pop %v1322
        %v1324 = vmul.f32 %v1323, %v1322
        %v1325 = vmul.f32 %v1324, %v1323
        %v1326 = vmul.f32 0.5, %v1325
        %v1327 = vsub.f32 1.5, %v1326
        %v1328 = vmul.f32 %v1323, %v1327
        %vm1329 = vweird.f32 %v1322
        %vm1330 = vweird.f32 %v1323
        %vm1331 = vmor %vm1329, %vm1330
        %v1332 = vsel %vm1331, %v1323, %v1328
        %v1333 = vmul.f32 %v1316, %v1332
        %v1335 = vperm.slane %v1302, 0
        %v1337 = vmul.f32 %v1335, %v1333
        %v1339 = vperm.slane %v1303, 0
        %v1341 = vadd.f32 %v1337, %v1339
        %v1342 = vpack.c.bf16 %v1341, %v1341
        %v1343 = vld [vmem:[%s637] sm:$0xf]
        %v1344 = vld [vmem:[%s637 + $0x4] sm:$0xf]
        %v1345 = vld [vmem:[%s637 + $0x8] sm:$0xf]
        %v1346 = vld [vmem:[%s637 + $0xc] sm:$0xf]
        %v1347 = vld [vmem:[%s640] sm:$0x1]
        %v1348 = vld [vmem:[%s645] sm:$0xf]
        %v1349 = vld [vmem:[%s645 + $0x4] sm:$0xf]
        %v1350 = vld [vmem:[%s645 + $0x8] sm:$0xf]
        %v1351 = vld [vmem:[%s645 + $0xc] sm:$0xf]
        %v1352 = vld [vmem:[%s645 + $0x10] sm:$0xf]
        %v1353 = vld [vmem:[%s645 + $0x14] sm:$0xf]
        %v1354 = vld [vmem:[%s645 + $0x18] sm:$0xf]
        %v1355 = vld [vmem:[%s645 + $0x1c] sm:$0xf]
        %v1356 = vld [vmem:[%s648] sm:$0x1]
        %v1358 = vperm.slane %v1347, 0
        %v1364 = vunpack.c.l.b16 %v1343
        %v1365 = vunpack.c.l.b16 %v1344
        %v1366 = vunpack.c.l.b16 %v1345
        %v1367 = vunpack.c.l.b16 %v1346
        %v1368 = vpack.c.b16 %v1365, %v1364
        %v1369 = vpack.c.b16 %v1367, %v1366
        %v1373 = vsel %vm740, %v1342, 0
        %1375 = vmatpush.bf16.msra.mxu0 0
        %1376 = vmatpush.bf16.msra.mxu0 0
        %1377 = vmatpush.bf16.msra.mxu0 0
        %1378 = vmatpush.bf16.msra.mxu0 0
        %1379 = vmatpush.bf16.msra.mxu0 0
        %1380 = vmatpush.bf16.msra.mxu0 0
        %1381 = vmatpush.bf16.msra.mxu0 %v1369
        %1382 = vmatpush.bf16.msra.mxu0 %v1368
        %1383 = vmatmul.bf16.gmra.mxu0 %v1373
        %v1384 = vpop.f32.mrf.mxu0
        %v1385 = vadd.f32 %v1358, %v1384
        %v1386 = vpop.f32.mrf.mxu0
        %1387 = vdwg.mxu0
        %v1388 = vmax.f32 %v1385, 0.0
        %v1389 = vpack.c.bf16 %v1388, %v1388
        %v1391 = vperm.slane %v1356, 0
        %v1401 = vunpack.c.l.b16 %v1348
        %v1402 = vunpack.c.l.b16 %v1349
        %v1403 = vunpack.c.l.b16 %v1350
        %v1404 = vunpack.c.l.b16 %v1351
        %v1405 = vunpack.c.l.b16 %v1352
        %v1406 = vunpack.c.l.b16 %v1353
        %v1407 = vunpack.c.l.b16 %v1354
        %v1408 = vunpack.c.l.b16 %v1355
        %v1409 = vpack.c.b16 %v1402, %v1401
        %v1410 = vpack.c.b16 %v1404, %v1403
        %v1411 = vpack.c.b16 %v1406, %v1405
        %v1412 = vpack.c.b16 %v1408, %v1407
        %vm1417 = vcmask 523264
        %v1419 = vsel %vm1417, %v1389, 0
        %1421 = vmatpush.bf16.msra.mxu0 0
        %1422 = vmatpush.bf16.msra.mxu0 0
        %1423 = vmatpush.bf16.msra.mxu0 0
        %1424 = vmatpush.bf16.msra.mxu0 0
        %1425 = vmatpush.bf16.msra.mxu0 %v1412
        %1426 = vmatpush.bf16.msra.mxu0 %v1411
        %1427 = vmatpush.bf16.msra.mxu0 %v1410
        %1428 = vmatpush.bf16.msra.mxu0 %v1409
        %1429 = vmatmul.bf16.gmra.mxu0 %v1419
        %v1430 = vpop.f32.mrf.mxu0
        %v1431 = vadd.f32 %v1391, %v1430
        %v1432 = vpop.f32.mrf.mxu0
        %1433 = vdwg.mxu0
        %v1434 = vld [vmem:[%s657] sm:$0x1]
        %v1435 = vld [vmem:[%s660] sm:$0x1]
        %v1436 = vadd.f32 %v1341, %v1431
        %v1437 = vsel %vm740, %v1436, 0.0
        %1438 = vadd.xlane.f32.xlu0 %v1437
        %v1439 = vpop.xlane.xlu0 %1438
        %v1440 = vmul.f32 %v1439, %v1314
        %v1441 = vsub.f32 %v1436, %v1440
        %v1442 = vmul.f32 %v1441, %v1441
        %v1443 = vsel %vm740, %v1442, 0.0
        %1444 = vadd.xlane.f32.xlu0 %v1443
        %v1445 = vpop.xlane.xlu0 %1444
        %v1446 = vmul.f32 %v1445, %v1314
        %v1447 = vadd.f32 %v1446, 1e-12
        %v1448 = vrsqrt.pop %v1447
        %v1449 = vmul.f32 %v1448, %v1447
        %v1450 = vmul.f32 %v1449, %v1448
        %v1451 = vmul.f32 0.5, %v1450
        %v1452 = vsub.f32 1.5, %v1451
        %v1453 = vmul.f32 %v1448, %v1452
        %vm1454 = vweird.f32 %v1447
        %vm1455 = vweird.f32 %v1448
        %vm1456 = vmor %vm1454, %vm1455
        %v1457 = vsel %vm1456, %v1448, %v1453
        %v1458 = vmul.f32 %v1441, %v1457
        %v1460 = vperm.slane %v1434, 0
        %v1462 = vmul.f32 %v1460, %v1458
        %v1464 = vperm.slane %v1435, 0
        %v1466 = vadd.f32 %v1462, %v1464
        %1467 = vst.msk [vmem:[#allocation2] sm:$0xff] %vm740, %v1466
        %p1468 = scmp.eq.s32.totalorder %s41, 1
        // Predicated region
        $region77: #{tpu_custom_call.1} parent=71 // pred_check
          %p1469 = pneg %p1468
        $region78: #{tpu_custom_call.1} parent=71 // pred_check_branch
          %1471 = sbr.rel (%p1469) target = $region80
        $region79: #{tpu_custom_call.1} parent=71 // pred_region
          %v1472 = vpack.c.bf16 %v1466, %v1466
          %vm1473 = vcmask 257024
          %1474 = vst.msk [vmem:[%s608] sm:$0xf] %vm1473, %v1472
        $region80: #{tpu_custom_call.1} parent=71 // pred_fallthru
          _
        %s1475 = sand.u32 %s394, 1
        %s1476 = scalar_lea.sflag [#allocation6], %s1475
        %s1477 = sand.u32 %s394, 1
        %s1478 = smul.addr %s1477, 4
        %s1479 = scalar_lea.vmem [#allocation5], %s1478
        // Predicated region
        $region81: #{tpu_custom_call.1} parent=71 // pred_check
          %p1480 = pneg %p404
        $region82: #{tpu_custom_call.1} parent=71 // pred_check_branch
          %1482 = sbr.rel (%p1480) target = $region84
        $region83: #{tpu_custom_call.1} parent=71 // pred_region
          %1484 = vsyncadd %s1476, 0
          %s1485 = smul.addr %s40, 4
          %s1486 = scalar_lea.hbm %s14, %s1485
          %s1488 = sshll.u32 %s1479, 4
          %s1489 = int_to_ptr.vmem [resolvable:$true] %s1488
          %s1490 = sshll.u32 %s1486, 4
          %s1491 = int_to_ptr.hbm [resolvable:$true] %s1490
          %1493 = dma.vmem_to_hbm [thread:$0]  %s1489, 64, %s1491, %s1476
        $region84: #{tpu_custom_call.1} parent=71 // pred_fallthru
          _
      $region72: #{tpu_custom_call.1} parent=5 // pred_fallthru
        _
      %p1494 = scmp.le.s32.totalorder 2, %s31
      // Predicated region
      $region85: #{tpu_custom_call.1} parent=5 // pred_check
        %p1495 = pneg %p1494
      $region86: #{tpu_custom_call.1} parent=5 // pred_check_branch
        %1497 = sbr.rel (%p1495) target = $region88
      $region87: #{tpu_custom_call.1} parent=5 // pred_region
        %s1498 = ssub.s32 %s31, 2
        // Predicated region
        $region89: #{tpu_custom_call.1} parent=87 // pred_check
          %p1499 = pneg %p410
        $region90: #{tpu_custom_call.1} parent=87 // pred_check_branch
          %1501 = sbr.rel (%p1499) target = $region92
        $region91: #{tpu_custom_call.1} parent=87 // pred_region
          %s1502 = sand.u32 %s395, 1
          %s1503 = scalar_lea.sflag [#allocation6], %s1502
          %s1504 = sand.u32 %s395, 1
          %s1505 = smul.addr %s1504, 4
          %s1506 = scalar_lea.vmem [#allocation5], %s1505
          %1508 = dma.done %s1503, 64
        $region92: #{tpu_custom_call.1} parent=87 // pred_fallthru
          _
      $region88: #{tpu_custom_call.1} parent=5 // pred_fallthru
        _
    $region6: #{tpu_custom_call.1} parent=1 // loop_footer
      %s35 = sadd.s32 1, %s31
    $region7: #{tpu_custom_call.1} parent=1 // loop_footer_branch
      %30 = sbr.rel target = $region3
    $region8: #{tpu_custom_call.1} parent=1 // loop_exit
      _
    %1509 = vsyncpa [#allocation6], 1
    %s1510 = scalar_lea.sflag [#allocation6], 1
    %1511 = vsyncpa %s1510, 1

</llo_original>
